<compile_context>
chip_gen: v5e
topology: v5e:2x2
jax: 0.10.0
libtpu: 0.0.40
codegen_flags: <defaults>
</compile_context>

<pallas_src>
import functools

import jax
import jax.numpy as jnp
from jax.experimental import pallas as pl
from jax.experimental.pallas import tpu as pltpu


def _cross_channel_kernel(
    x_ref,      # (M, D_in)        flattened residual rows, M = Bb*N
    q_ref,      # (G, N, dh)       G = Bb*heads (batch-major, head-minor)
    kt_ref,     # (G, dh, Nkv)     keys pre-transposed in the wrapper
    v_ref,      # (G, Nkv, dh)
    wo_ref,     # (G, dh, D_in)    to_out weight, per-head slices tiled across Bb
    vec_ref,    # (8, W)           packed [b_out, ln_g, ln_b, b1, b2]
    w1_ref,     # (D_in, H)        FFN first linear
    w2_ref,     # (H, D_in)        FFN second linear
    out_ref,    # (M, D_in)
    *,
    bb: int,
    heads: int,
    d_in: int,
    hidden: int,
    eps: float,
    scale: float,
    approx_recip: bool,
):
    q = q_ref[...]          # (G, N, dh)
    kt = kt_ref[...]        # (G, dh, Nkv)
    v = v_ref[...]          # (G, Nkv, dh)
    n_q = q.shape[1]

    # ---- attention scores: standard batched A@B (K already transposed -> no relayout) ----
    s = jnp.einsum("gnd,gdm->gnm", q, kt, preferred_element_type=jnp.float32) * scale
    s = s - jnp.max(s, axis=-1, keepdims=True)
    e = jnp.exp(s)
    denom = jnp.sum(e, axis=-1, keepdims=True)
    if approx_recip:
        attn = e * pl.reciprocal(denom, approx=True)   # EUP slot (bf16 fast path)
    else:
        attn = e / denom                               # exact divide (f32 parity path)

    ctx = jnp.einsum(
        "gnm,gmd->gnd", attn.astype(v.dtype), v, preferred_element_type=jnp.float32
    )  # (G, N, dh)

    # ---- to_out: one batched dot over all (batch, head) blocks, then head-sum over a
    # leading axis (vreg adds). Equivalent to the single (M, heads*dh)@(heads*dh, D_in)
    # contraction; the lane-merge (0,2,1,3) transpose that form needs is not lowerable. ----
    wo = wo_ref[...]
    projh = jnp.einsum(
        "gnd,gdc->gnc", ctx.astype(wo.dtype), wo, preferred_element_type=jnp.float32
    )                                                     # (G, N, D_in)
    proj = projh.reshape(bb, heads, n_q, d_in).sum(axis=1).reshape(bb * n_q, d_in)

    # ---- packed small vectors ----
    b_out = vec_ref[0:1, :d_in]
    ln_g = vec_ref[1:2, :d_in]
    ln_b = vec_ref[2:3, :d_in]
    b1 = vec_ref[3:4, :hidden]
    b2 = vec_ref[4:5, :d_in]

    # ---- residual + FeedForward on the flattened (Bb*N, D_in) row block ----
    y = x_ref[...].astype(jnp.float32) + proj + b_out

    mu = jnp.mean(y, axis=-1, keepdims=True)
    var = jnp.mean((y - mu) ** 2, axis=-1, keepdims=True)
    yn = (y - mu) * jax.lax.rsqrt(var + eps)
    yn = yn * ln_g + ln_b

    w1 = w1_ref[...]
    h1 = jnp.dot(yn.astype(w1.dtype), w1, preferred_element_type=jnp.float32) + b1
    # exact (erf-based) GELU, matching torch.nn.GELU() default
    g = 0.5 * h1 * (1.0 + jax.lax.erf(h1 * jnp.float32(0.7071067811865476)))
    w2 = w2_ref[...]
    out = jnp.dot(g.astype(w2.dtype), w2, preferred_element_type=jnp.float32) + b2

    out_ref[...] = out.astype(out_ref.dtype)


def _pick_batch_block(batch: int, seq: int, target_rows: int = 256) -> int:
    """Fat grid steps (Bb*seq rows) amortize the ~0.35us/step overhead and raise MXU row
    utilization; keep >=2 grid blocks when the batch allows so both v7x TensorCores get
    work (v5e/v6e have one TC, there only the step count matters)."""
    divisors = [d for d in range(1, batch + 1) if batch % d == 0]
    want = max(1, -(-target_rows // seq))                      # ceil(target_rows / seq)
    ok = [d for d in divisors if d <= want and (d == batch or (d * seq) % 8 == 0)]
    bb = max(ok) if ok else 1
    if batch // bb < 2 and batch >= 2:
        two_blocks = [d for d in ok if batch // d >= 2]
        if two_blocks:
            bb = max(two_blocks)
    return bb


def cross_channel_transformer_layer(
    x, x_q, k_agg, v_agg, params, *, heads, dim_head,
    matmul_dtype=jnp.bfloat16, batch_block=None, exact_softmax=None,
):
    """CrossChannelTransformerEncoderLayer forward as one Pallas TPU kernel.

    matmul_dtype: bf16 (default) feeds bf16 MXU operands with f32 accumulation; this is the
    fast path on v5e, v6e and v7x alike (the MXU is bf16-native on all three generations).
    float32 gives exact parity with the PyTorch forward (exact softmax divide). Elementwise
    math (softmax / LayerNorm / GELU) is always f32. Dropout is a no-op (eval / p = 0).
    """
    B, N, D_in = x.shape
    inner = heads * dim_head
    assert x_q.shape == (B, N, inner)
    Nkv = k_agg.shape[1]
    H = params["w1"].shape[1]

    bb = batch_block if batch_block is not None else _pick_batch_block(B, N)
    assert B % bb == 0, f"batch_block={bb} must divide batch={B}"
    assert bb == B or (bb * N) % 8 == 0, "sub-batch row block must be sublane (8) aligned"
    grid = B // bb

    # Head split / K pre-transpose done once in the wrapper. At production N/Nkv keep this
    # fused into the upstream projections so Q/K/V arrive pre-split (avoids an extra HBM
    # round-trip); here it is tiny one-time glue outside the kernel.
    def heads_nd(t):                                    # (B, S, inner) -> (B*heads, S, dh)
        S = t.shape[1]
        return (t.reshape(B, S, heads, dim_head).transpose(0, 2, 1, 3)
                 .reshape(B * heads, S, dim_head).astype(matmul_dtype))

    q3 = heads_nd(x_q)                                  # (B*heads, N, dh)
    v3 = heads_nd(v_agg)                                # (B*heads, Nkv, dh)
    kt3 = (k_agg.reshape(B, Nkv, heads, dim_head).transpose(0, 2, 3, 1)
              .reshape(B * heads, dim_head, Nkv).astype(matmul_dtype))   # pre-transposed K

    wo_tiled = jnp.tile(
        params["w_out"].reshape(heads, dim_head, D_in), (bb, 1, 1)
    ).astype(matmul_dtype)                              # (bb*heads, dh, D_in), grid-constant
    w1 = params["w1"].astype(matmul_dtype)
    w2 = params["w2"].astype(matmul_dtype)

    # Pack the five tiny vectors into one (8, W) slab -> one DMA stream instead of five.
    W = max(D_in, H)
    vec = jnp.zeros((8, W), jnp.float32)
    vec = vec.at[0, :D_in].set(params["b_out"].reshape(-1).astype(jnp.float32))
    vec = vec.at[1, :D_in].set(params["ln_g"].reshape(-1).astype(jnp.float32))
    vec = vec.at[2, :D_in].set(params["ln_b"].reshape(-1).astype(jnp.float32))
    vec = vec.at[3, :H].set(params["b1"].reshape(-1).astype(jnp.float32))
    vec = vec.at[4, :D_in].set(params["b2"].reshape(-1).astype(jnp.float32))

    x_flat = x.reshape(B * N, D_in)                     # free reshape; rows are batch-major

    if exact_softmax is None:
        exact_softmax = (jnp.dtype(matmul_dtype) == jnp.float32)

    kernel = functools.partial(
        _cross_channel_kernel,
        bb=bb, heads=heads, d_in=D_in, hidden=H,
        eps=1e-5, scale=dim_head ** -0.5, approx_recip=not exact_softmax,
    )

    Mb, Gb = bb * N, bb * heads
    # NOTE: w_out/vec/w1/w2 are grid-invariant; with production-sized weights mark them
    # pipeline_mode=pl.Buffered(1) to reclaim the wasted second buffer (moot at ~20 KB here).
    in_specs = [
        pl.BlockSpec((Mb, D_in), lambda b: (b, 0)),                    # x rows
        pl.BlockSpec((Gb, N, dim_head), lambda b: (b, 0, 0)),          # q
        pl.BlockSpec((Gb, dim_head, Nkv), lambda b: (b, 0, 0)),        # k^T
        pl.BlockSpec((Gb, Nkv, dim_head), lambda b: (b, 0, 0)),        # v
        pl.BlockSpec((Gb, dim_head, D_in), lambda b: (0, 0, 0)),       # w_out (constant)
        pl.BlockSpec((8, W), lambda b: (0, 0)),                        # packed vectors
        pl.BlockSpec((D_in, H), lambda b: (0, 0)),                     # w1
        pl.BlockSpec((H, D_in), lambda b: (0, 0)),                     # w2
    ]
    out_spec = pl.BlockSpec((Mb, D_in), lambda b: (b, 0))

    # Advisory cost estimate so XLA can overlap this small kernel with surrounding work.
    itemsz = jnp.dtype(matmul_dtype).itemsize
    flops = int(
        2 * B * heads * N * (2 * Nkv * dim_head + dim_head * D_in)   # qk^T + attn@v + to_out
        + 2 * B * N * (D_in * H + H * D_in)                          # FFN
    )
    transcendentals = int(B * heads * N * Nkv + B * N * (H + 1))
    bytes_accessed = int(
        (x_flat.size + B * N * D_in) * x.dtype.itemsize
        + (q3.size + kt3.size + v3.size) * itemsz
        + grid * (wo_tiled.size + w1.size + w2.size) * itemsz
        + grid * vec.size * 4
    )

    out_flat = pl.pallas_call(
        kernel,
        out_shape=jax.ShapeDtypeStruct((B * N, D_in), x.dtype),
        grid=(grid,),
        in_specs=in_specs,
        out_specs=out_spec,
        compiler_params=pltpu.CompilerParams(
            # >=2 batch blocks -> both v7x TensorCores busy; serial loop on v5e/v6e.
            dimension_semantics=("parallel",),
        ),
        cost_estimate=pl.CostEstimate(
            flops=flops, transcendentals=transcendentals, bytes_accessed=bytes_accessed,
        ),
    )(x_flat, q3, kt3, v3, wo_tiled, vec, w1, w2)

    return out_flat.reshape(B, N, D_in)


def _reference(x, x_q, k_agg, v_agg, p, *, heads, dim_head):
    """Plain-JAX reference mirroring the PyTorch forward (dropout disabled)."""
    B, N, _ = x_q.shape

    def split_heads(t):
        return t.reshape(t.shape[0], t.shape[1], heads, dim_head).transpose(0, 2, 1, 3)

    q, k, v = split_heads(x_q), split_heads(k_agg), split_heads(v_agg)
    dots = jnp.einsum("bhnd,bhmd->bhnm", q, k) * (dim_head ** -0.5)
    attn = jax.nn.softmax(dots, axis=-1)
    o = jnp.einsum("bhnm,bhmd->bhnd", attn, v)
    o = o.transpose(0, 2, 1, 3).reshape(B, N, heads * dim_head)
    y = x + (o @ p["w_out"] + p["b_out"][0])

    mu = y.mean(-1, keepdims=True)
    var = ((y - mu) ** 2).mean(-1, keepdims=True)
    yn = (y - mu) / jnp.sqrt(var + 1e-5) * p["ln_g"][0] + p["ln_b"][0]
    h1 = yn @ p["w1"] + p["b1"][0]
    g = jax.nn.gelu(h1, approximate=False)
    return g @ p["w2"] + p["b2"][0]


if __name__ == "__main__":
    # Module hyper-params: input_dimension=32, number_of_heads=4, dim_head=16 -> inner=64,
    # mlp_dims=(32, 32) -> hidden=64, out_dim=None.  B=4 so the default batch-block heuristic
    # picks Bb=2 (fat steps) while keeping 2 grid blocks (both v7x TensorCores).
    B, N = 4, 8
    D_IN, HEADS, DIM_HEAD = 32, 4, 16
    INNER = HEADS * DIM_HEAD
    HIDDEN = 32 + 32
    N_OTHER_CHANNELS = 3

    key = jax.random.PRNGKey(0)
    ks = jax.random.split(key, 16)

    x = jax.random.normal(ks[0], (B, N, D_IN), jnp.float32)
    x_q = jax.random.normal(ks[1], (B, N, INNER), jnp.float32)
    other_channels_output = []
    for c in range(N_OTHER_CHANNELS):
        kc = jax.random.normal(ks[2 + 2 * c], (B, N, INNER), jnp.float32)
        vc = jax.random.normal(ks[3 + 2 * c], (B, N, INNER), jnp.float32)
        other_channels_output.append((None, None, kc, vc))

    # torch.cat(..., dim=-2) aggregation (glue, stays in plain JAX)
    k_agg = jnp.concatenate([k for _, _, k, _ in other_channels_output], axis=-2)
    v_agg = jnp.concatenate([v for _, _, _, v in other_channels_output], axis=-2)

    # Deterministic synthetic parameters (weights stored as [in, out]).
    params = {
        "w_out": 0.05 * jax.random.normal(ks[10], (INNER, D_IN), jnp.float32),
        "b_out": 0.01 * jax.random.normal(ks[11], (1, D_IN), jnp.float32),
        "ln_g": jnp.ones((1, D_IN), jnp.float32),
        "ln_b": jnp.zeros((1, D_IN), jnp.float32),
        "w1": 0.05 * jax.random.normal(ks[12], (D_IN, HIDDEN), jnp.float32),
        "b1": 0.01 * jax.random.normal(ks[13], (1, HIDDEN), jnp.float32),
        "w2": 0.05 * jax.random.normal(ks[14], (HIDDEN, D_IN), jnp.float32),
        "b2": 0.01 * jax.random.normal(ks[15], (1, D_IN), jnp.float32),
    }

    ref = _reference(x, x_q, k_agg, v_agg, params, heads=HEADS, dim_head=DIM_HEAD)

    # f32 parity path (exact softmax divide), default batch blocking (Bb=2, grid=2).
    out_f32 = cross_channel_transformer_layer(
        x, x_q, k_agg, v_agg, params, heads=HEADS, dim_head=DIM_HEAD,
        matmul_dtype=jnp.float32,
    )
    out_f32 = jax.block_until_ready(out_f32)
    assert out_f32.shape == (B, N, D_IN)
    assert jnp.allclose(out_f32, ref, rtol=1e-3, atol=1e-3), (
        float(jnp.max(jnp.abs(out_f32 - ref)))
    )

    # bf16 MXU fast path (default dtype; valid on v5e/v6e/v7x), looser tolerance.
    out_bf16 = cross_channel_transformer_layer(
        x, x_q, k_agg, v_agg, params, heads=HEADS, dim_head=DIM_HEAD,
        matmul_dtype=jnp.bfloat16,
    )
    out_bf16 = jax.block_until_ready(out_bf16)
    assert out_bf16.shape == (B, N, D_IN)
    assert jnp.allclose(out_bf16, ref, rtol=3e-2, atol=3e-2), (
        float(jnp.max(jnp.abs(out_bf16 - ref)))
    )

    # Per-batch-element blocking path (Bb=1, grid=4) must agree with the reference too.
    out_bb1 = cross_channel_transformer_layer(
        x, x_q, k_agg, v_agg, params, heads=HEADS, dim_head=DIM_HEAD,
        matmul_dtype=jnp.float32, batch_block=1,
    )
    out_bb1 = jax.block_until_ready(out_bb1)
    assert jnp.allclose(out_bb1, ref, rtol=1e-3, atol=1e-3), (
        float(jnp.max(jnp.abs(out_bb1 - ref)))
    )

    print("KERNEL_OK")
</pallas_src>

<mosaic_0001>
module attributes {stable_mosaic.version = 11 : i64} {
  func.func @_cross_channel_kernel(%arg0: i32, %arg1: memref<16x32xf32, #tpu.memory_space<vmem>>, %arg2: memref<8x8x16xf32, #tpu.memory_space<vmem>>, %arg3: memref<8x16x24xf32, #tpu.memory_space<vmem>>, %arg4: memref<8x24x16xf32, #tpu.memory_space<vmem>>, %arg5: memref<8x16x32xf32, #tpu.memory_space<vmem>>, %arg6: memref<8x64xf32, #tpu.memory_space<vmem>>, %arg7: memref<32x64xf32, #tpu.memory_space<vmem>>, %arg8: memref<64x32xf32, #tpu.memory_space<vmem>>, %arg9: memref<16x32xf32, #tpu.memory_space<vmem>>) attributes {dimension_semantics = [#tpu.dimension_semantics<parallel>], iteration_bounds = array<i64: 2>, scalar_prefetch = 0 : i64, scratch_operands = 0 : i64, tpu.core_type = #tpu.core_type<tc>, window_params = [{transform_indices = @transform_0, window_bounds = array<i64: 16, 32>}, {transform_indices = @transform_1, window_bounds = array<i64: 8, 8, 16>}, {transform_indices = @transform_2, window_bounds = array<i64: 8, 16, 24>}, {transform_indices = @transform_3, window_bounds = array<i64: 8, 24, 16>}, {pipeline_mode = #tpu.pipeline_mode<synchronous>, transform_indices = @transform_4, window_bounds = array<i64: 8, 16, 32>}, {pipeline_mode = #tpu.pipeline_mode<synchronous>, transform_indices = @transform_5, window_bounds = array<i64: 8, 64>}, {pipeline_mode = #tpu.pipeline_mode<synchronous>, transform_indices = @transform_6, window_bounds = array<i64: 32, 64>}, {pipeline_mode = #tpu.pipeline_mode<synchronous>, transform_indices = @transform_7, window_bounds = array<i64: 64, 32>}, {transform_indices = @transform_8, window_bounds = array<i64: 16, 32>}]} {
    %c0 = arith.constant 0 : index
    %c0_0 = arith.constant 0 : index
    %c0_1 = arith.constant 0 : index
    %0 = vector.load %arg2[%c0, %c0_0, %c0_1] : memref<8x8x16xf32, #tpu.memory_space<vmem>>, vector<8x8x16xf32>
    %c0_2 = arith.constant 0 : index
    %c0_3 = arith.constant 0 : index
    %c0_4 = arith.constant 0 : index
    %1 = vector.load %arg3[%c0_2, %c0_3, %c0_4] : memref<8x16x24xf32, #tpu.memory_space<vmem>>, vector<8x16x24xf32>
    %c0_5 = arith.constant 0 : index
    %c0_6 = arith.constant 0 : index
    %c0_7 = arith.constant 0 : index
    %2 = vector.load %arg4[%c0_5, %c0_6, %c0_7] : memref<8x24x16xf32, #tpu.memory_space<vmem>>, vector<8x24x16xf32>
    "tpu.trace_start"() <{level = 10 : i32, message = "gnd,gdm->gnm"}> : () -> ()
    %cst = arith.constant dense<0.000000e+00> : vector<8x8x24xf32>
    %3 = tpu.matmul %0, %1, %cst {dimension_numbers = #tpu.dot_dimension_numbers<[2], [1], [1], [2], [0, 0, 0, 1, 1, 2], [0], [0]>} : vector<8x8x16xf32>, vector<8x16x24xf32>, vector<8x8x24xf32> -> vector<8x8x24xf32>
    "tpu.trace_stop"() : () -> ()
    %cst_8 = arith.constant 2.500000e-01 : f32
    %4 = vector.broadcast %cst_8 : f32 to vector<8x8x24xf32>
    %5 = arith.mulf %3, %4 : vector<8x8x24xf32>
    %cst_9 = arith.constant dense<0xFF800000> : vector<8x8xf32>
    %6 = vector.multi_reduction <maximumf>, %5, %cst_9 [2] : vector<8x8x24xf32> to vector<8x8xf32>
    %7 = vector.shape_cast %6 : vector<8x8xf32> to vector<8x8x1xf32>
    %8 = vector.broadcast %7 : vector<8x8x1xf32> to vector<8x8x24xf32>
    %9 = arith.subf %5, %8 : vector<8x8x24xf32>
    %10 = math.exp %9 : vector<8x8x24xf32>
    %cst_10 = arith.constant dense<0.000000e+00> : vector<8x8xf32>
    %11 = vector.multi_reduction <add>, %10, %cst_10 [2] : vector<8x8x24xf32> to vector<8x8xf32>
    %12 = vector.shape_cast %11 : vector<8x8xf32> to vector<8x8x1xf32>
    %13 = vector.broadcast %12 : vector<8x8x1xf32> to vector<8x8x24xf32>
    %14 = arith.divf %10, %13 : vector<8x8x24xf32>
    "tpu.trace_start"() <{level = 10 : i32, message = "gnm,gmd->gnd"}> : () -> ()
    %cst_11 = arith.constant dense<0.000000e+00> : vector<8x8x16xf32>
    %15 = tpu.matmul %14, %2, %cst_11 {dimension_numbers = #tpu.dot_dimension_numbers<[2], [1], [1], [2], [0, 0, 0, 1, 1, 2], [0], [0]>} : vector<8x8x24xf32>, vector<8x24x16xf32>, vector<8x8x16xf32> -> vector<8x8x16xf32>
    "tpu.trace_stop"() : () -> ()
    %c0_12 = arith.constant 0 : index
    %c0_13 = arith.constant 0 : index
    %c0_14 = arith.constant 0 : index
    %16 = vector.load %arg5[%c0_12, %c0_13, %c0_14] : memref<8x16x32xf32, #tpu.memory_space<vmem>>, vector<8x16x32xf32>
    "tpu.trace_start"() <{level = 10 : i32, message = "gnd,gdc->gnc"}> : () -> ()
    %cst_15 = arith.constant dense<0.000000e+00> : vector<8x8x32xf32>
    %17 = tpu.matmul %15, %16, %cst_15 {dimension_numbers = #tpu.dot_dimension_numbers<[2], [1], [1], [2], [0, 0, 0, 1, 1, 2], [0], [0]>} : vector<8x8x16xf32>, vector<8x16x32xf32>, vector<8x8x32xf32> -> vector<8x8x32xf32>
    "tpu.trace_stop"() : () -> ()
    %18 = vector.shape_cast %17 : vector<8x8x32xf32> to vector<2x4x8x32xf32>
    %cst_16 = arith.constant dense<0.000000e+00> : vector<2x8x32xf32>
    %19 = vector.multi_reduction <add>, %18, %cst_16 [1] : vector<2x4x8x32xf32> to vector<2x8x32xf32>
    %20 = vector.shape_cast %19 : vector<2x8x32xf32> to vector<16x32xf32>
    %c0_17 = arith.constant 0 : index
    %c0_18 = arith.constant 0 : index
    %21 = vector.load %arg6[%c0_17, %c0_18] : memref<8x64xf32, #tpu.memory_space<vmem>>, vector<1x32xf32>
    %c1 = arith.constant 1 : index
    %c0_19 = arith.constant 0 : index
    %22 = vector.load %arg6[%c1, %c0_19] : memref<8x64xf32, #tpu.memory_space<vmem>>, vector<1x32xf32>
    %c2 = arith.constant 2 : index
    %c0_20 = arith.constant 0 : index
    %23 = vector.load %arg6[%c2, %c0_20] : memref<8x64xf32, #tpu.memory_space<vmem>>, vector<1x32xf32>
    %c3 = arith.constant 3 : index
    %c0_21 = arith.constant 0 : index
    %24 = vector.load %arg6[%c3, %c0_21] : memref<8x64xf32, #tpu.memory_space<vmem>>, vector<1x64xf32>
    %c4 = arith.constant 4 : index
    %c0_22 = arith.constant 0 : index
    %25 = vector.load %arg6[%c4, %c0_22] : memref<8x64xf32, #tpu.memory_space<vmem>>, vector<1x32xf32>
    %c0_23 = arith.constant 0 : index
    %c0_24 = arith.constant 0 : index
    %26 = vector.load %arg1[%c0_23, %c0_24] : memref<16x32xf32, #tpu.memory_space<vmem>>, vector<16x32xf32>
    %27 = arith.addf %26, %20 : vector<16x32xf32>
    %28 = vector.broadcast %21 : vector<1x32xf32> to vector<16x32xf32>
    %29 = arith.addf %27, %28 : vector<16x32xf32>
    %cst_25 = arith.constant dense<0.000000e+00> : vector<16xf32>
    %30 = vector.multi_reduction <add>, %29, %cst_25 [1] : vector<16x32xf32> to vector<16xf32>
    %31 = vector.shape_cast %30 : vector<16xf32> to vector<16x1xf32>
    %cst_26 = arith.constant 3.200000e+01 : f32
    %32 = vector.broadcast %cst_26 : f32 to vector<16x1xf32>
    %33 = arith.divf %31, %32 : vector<16x1xf32>
    %34 = vector.broadcast %33 : vector<16x1xf32> to vector<16x32xf32>
    %35 = arith.subf %29, %34 : vector<16x32xf32>
    %36 = arith.mulf %35, %35 : vector<16x32xf32>
    %cst_27 = arith.constant dense<0.000000e+00> : vector<16xf32>
    %37 = vector.multi_reduction <add>, %36, %cst_27 [1] : vector<16x32xf32> to vector<16xf32>
    %38 = vector.shape_cast %37 : vector<16xf32> to vector<16x1xf32>
    %cst_28 = arith.constant 3.200000e+01 : f32
    %39 = vector.broadcast %cst_28 : f32 to vector<16x1xf32>
    %40 = arith.divf %38, %39 : vector<16x1xf32>
    %41 = vector.broadcast %33 : vector<16x1xf32> to vector<16x32xf32>
    %42 = arith.subf %29, %41 : vector<16x32xf32>
    %cst_29 = arith.constant 9.99999974E-6 : f32
    %43 = vector.broadcast %cst_29 : f32 to vector<16x1xf32>
    %44 = arith.addf %40, %43 : vector<16x1xf32>
    %45 = math.rsqrt %44 : vector<16x1xf32>
    %46 = vector.broadcast %45 : vector<16x1xf32> to vector<16x32xf32>
    %47 = arith.mulf %42, %46 : vector<16x32xf32>
    %48 = vector.broadcast %22 : vector<1x32xf32> to vector<16x32xf32>
    %49 = arith.mulf %47, %48 : vector<16x32xf32>
    %50 = vector.broadcast %23 : vector<1x32xf32> to vector<16x32xf32>
    %51 = arith.addf %49, %50 : vector<16x32xf32>
    %c0_30 = arith.constant 0 : index
    %c0_31 = arith.constant 0 : index
    %52 = vector.load %arg7[%c0_30, %c0_31] : memref<32x64xf32, #tpu.memory_space<vmem>>, vector<32x64xf32>
    %cst_32 = arith.constant dense<0.000000e+00> : vector<16x64xf32>
    %53 = tpu.matmul %51, %52, %cst_32 {dimension_numbers = #tpu.dot_dimension_numbers<[1], [0], [0], [1], [0, 0, 1, 1], [], []>} : vector<16x32xf32>, vector<32x64xf32>, vector<16x64xf32> -> vector<16x64xf32>
    %54 = vector.broadcast %24 : vector<1x64xf32> to vector<16x64xf32>
    %55 = arith.addf %53, %54 : vector<16x64xf32>
    %cst_33 = arith.constant 5.000000e-01 : f32
    %56 = vector.broadcast %cst_33 : f32 to vector<16x64xf32>
    %57 = arith.mulf %56, %55 : vector<16x64xf32>
    %cst_34 = arith.constant 0.707106769 : f32
    %58 = vector.broadcast %cst_34 : f32 to vector<16x64xf32>
    %59 = arith.mulf %55, %58 : vector<16x64xf32>
    %60 = math.erf %59 : vector<16x64xf32>
    %cst_35 = arith.constant 1.000000e+00 : f32
    %61 = vector.broadcast %cst_35 : f32 to vector<16x64xf32>
    %62 = arith.addf %61, %60 : vector<16x64xf32>
    %63 = arith.mulf %57, %62 : vector<16x64xf32>
    %c0_36 = arith.constant 0 : index
    %c0_37 = arith.constant 0 : index
    %64 = vector.load %arg8[%c0_36, %c0_37] : memref<64x32xf32, #tpu.memory_space<vmem>>, vector<64x32xf32>
    %cst_38 = arith.constant dense<0.000000e+00> : vector<16x32xf32>
    %65 = tpu.matmul %63, %64, %cst_38 {dimension_numbers = #tpu.dot_dimension_numbers<[1], [0], [0], [1], [0, 0, 1, 1], [], []>} : vector<16x64xf32>, vector<64x32xf32>, vector<16x32xf32> -> vector<16x32xf32>
    %66 = vector.broadcast %25 : vector<1x32xf32> to vector<16x32xf32>
    %67 = arith.addf %65, %66 : vector<16x32xf32>
    %c0_39 = arith.constant 0 : index
    %c0_40 = arith.constant 0 : index
    %68 = vector.load %arg9[%c0_39, %c0_40] : memref<16x32xf32, #tpu.memory_space<vmem>>, vector<16x32xf32>
    tpu.vector_store %arg9[%c0_39, %c0_40], %67 {strides = array<i32>} : memref<16x32xf32, #tpu.memory_space<vmem>>, vector<16x32xf32>,
    return
  }
  func.func @transform_0(%arg0: i32) -> (i32, i32) {
    %c0_i32 = arith.constant 0 : i32
    %c0_i32_0 = arith.constant 0 : i32
    return %arg0, %c0_i32 : i32, i32
  }
  func.func @transform_1(%arg0: i32) -> (i32, i32, i32) {
    %c0_i32 = arith.constant 0 : i32
    %c0_i32_0 = arith.constant 0 : i32
    %c0_i32_1 = arith.constant 0 : i32
    return %arg0, %c0_i32, %c0_i32_0 : i32, i32, i32
  }
  func.func @transform_2(%arg0: i32) -> (i32, i32, i32) {
    %c0_i32 = arith.constant 0 : i32
    %c0_i32_0 = arith.constant 0 : i32
    %c0_i32_1 = arith.constant 0 : i32
    return %arg0, %c0_i32, %c0_i32_0 : i32, i32, i32
  }
  func.func @transform_3(%arg0: i32) -> (i32, i32, i32) {
    %c0_i32 = arith.constant 0 : i32
    %c0_i32_0 = arith.constant 0 : i32
    %c0_i32_1 = arith.constant 0 : i32
    return %arg0, %c0_i32, %c0_i32_0 : i32, i32, i32
  }
  func.func @transform_4(%arg0: i32) -> (i32, i32, i32) {
    %c0_i32 = arith.constant 0 : i32
    %c0_i32_0 = arith.constant 0 : i32
    %c0_i32_1 = arith.constant 0 : i32
    %c0_i32_2 = arith.constant 0 : i32
    return %c0_i32, %c0_i32_0, %c0_i32_1 : i32, i32, i32
  }
  func.func @transform_5(%arg0: i32) -> (i32, i32) {
    %c0_i32 = arith.constant 0 : i32
    %c0_i32_0 = arith.constant 0 : i32
    %c0_i32_1 = arith.constant 0 : i32
    return %c0_i32, %c0_i32_0 : i32, i32
  }
  func.func @transform_6(%arg0: i32) -> (i32, i32) {
    %c0_i32 = arith.constant 0 : i32
    %c0_i32_0 = arith.constant 0 : i32
    %c0_i32_1 = arith.constant 0 : i32
    return %c0_i32, %c0_i32_0 : i32, i32
  }
  func.func @transform_7(%arg0: i32) -> (i32, i32) {
    %c0_i32 = arith.constant 0 : i32
    %c0_i32_0 = arith.constant 0 : i32
    %c0_i32_1 = arith.constant 0 : i32
    return %c0_i32, %c0_i32_0 : i32, i32
  }
  func.func @transform_8(%arg0: i32) -> (i32, i32) {
    %c0_i32 = arith.constant 0 : i32
    %c0_i32_0 = arith.constant 0 : i32
    return %arg0, %c0_i32 : i32, i32
  }
}

</mosaic_0001>

<llo_original>
// kernel: tpu_custom_call.1
$region0: #{tpu_custom_call.1}
  #allocation0 [shape = 'u32[]', space=smem, size = 0x4, offset = 0x4, fixed_abs, tag = 'smem constant byte address 0x4 - core index']
  #allocation1 [shape = 'u32[72,128]{1,0:T(1,128)}', space=vmem, size = 0x9000, scoped, tag = 'internal scratch']
  %s0 = inlined_call_operand.vmem [shape: f32[32,32], index: 0, kind: input, shape index: {}]
  %s1 = inlined_call_operand.vmem [shape: f32[16,8,16], index: 1, kind: input, shape index: {}]
  %s2 = inlined_call_operand.vmem [shape: f32[16,16,24], index: 2, kind: input, shape index: {}]
  %s3 = inlined_call_operand.vmem [shape: f32[16,24,16], index: 3, kind: input, shape index: {}]
  %s4 = inlined_call_operand.vmem [shape: f32[8,16,32], index: 4, kind: input, shape index: {}]
  %s5 = inlined_call_operand.vmem [shape: f32[8,64], index: 5, kind: input, shape index: {}]
  %s6 = inlined_call_operand.vmem [shape: f32[32,64], index: 6, kind: input, shape index: {}]
  %s7 = inlined_call_operand.vmem [shape: f32[64,32], index: 7, kind: input, shape index: {}]
  %s8 = inlined_call_operand.hbm [shape: f32[32,32], index: 8, kind: output, shape index: {}]
  %s9 = sld [smem:[#allocation0]]
  $region65: #{tpu_custom_call.1} parent=0
    _
  %s11 = ssub.s32 1, %s9
  %s12 = scalar_select 0, %s11, %s9
  $region1: #{tpu_custom_call.1} parent=0
    #allocation2 [shape = 'u8[16384]{0}', space=vmem, size = 0x4000, scoped, tag = 'output window, operand 0']
    #allocation3 [shape = 's32[2]{0}', space=sflag, size = 0x8, scoped, tag = 'scoped memory for tpu_custom_call.1']
    %13 = vsyncpa [#allocation3], 0
    %s14 = scalar_lea.sflag [#allocation3], 1
    %15 = vsyncpa %s14, 0
    loop: start=0, step=1, limit=4
    $region2: #{tpu_custom_call.1} parent=1 // loop_pre_header
      _
    $region3: #{tpu_custom_call.1} parent=1 // loop_header
      %s17 = sphi 0, %s21
      %p18 = scmp.ge.s32.totalorder %s17, 4
      %s27 = sphi 0, %s29
      %s30 = sphi 0, %s27
      %s31 = sphi 0, %s30
      %s47 = sphi 0, %s31
      %s53 = sphi 0, %s55
      %s56 = sphi 0, %s53
      %s57 = sphi 0, %s56
      %s73 = sphi 0, %s57
      %s79 = sphi 0, %s81
      %s82 = sphi 0, %s79
      %s83 = sphi 0, %s82
      %s99 = sphi 0, %s83
      %s105 = sphi 0, %s107
      %s108 = sphi 0, %s105
      %s109 = sphi 0, %s108
      %s125 = sphi 0, %s109
      %s129 = sphi 0, %s129
      %s131 = sphi 0, %s129
      %s132 = sphi 0, %s131
      %s146 = sphi 0, %s132
      %s150 = sphi 0, %s150
      %s152 = sphi 0, %s150
      %s153 = sphi 0, %s152
      %s167 = sphi 0, %s153
      %s171 = sphi 0, %s171
      %s173 = sphi 0, %s171
      %s174 = sphi 0, %s173
      %s188 = sphi 0, %s174
      %s192 = sphi 0, %s192
      %s194 = sphi 0, %s192
      %s195 = sphi 0, %s194
      %s209 = sphi 0, %s195
      %s215 = sphi 0, %s217
      %s218 = sphi 0, %s215
      %s219 = sphi 0, %s218
      %s235 = sphi 0, %s219
    $region4: #{tpu_custom_call.1} parent=1 // loop_header_branch
      %20 = sbr.rel (%p18) target = $region8
    $region5: #{tpu_custom_call.1} parent=1 // loop_body
      %s22 = ssub.s32 %s17, 1
      %s23 = ssub.s32 %s17, 2
      %s24 = sadd.s32 %s17, 1
      %s25 = ssub.s32 %s17, %s24
      %p26 = scmp.eq.s32.totalorder %s25, 0
      %s28 = sadd.s32 %s27, 1
      %s29 = scalar_select %p26, %s27, %s28
      %p32 = pneg %p26
      %p33 = scmp.eq.s32.totalorder %s17, 1
      %p34 = por %p32, %p33
      %p35 = scmp.ne.s32.totalorder %s27, %s30
      %p36 = scmp.eq.s32.totalorder %s17, 0
      %p37 = por %p35, %p36
      %p38 = scmp.ne.s32.totalorder %s27, %s30
      %p39 = scmp.eq.s32.totalorder %s22, 1
      %p40 = por %p38, %p39
      %p41 = scmp.ne.s32.totalorder %s30, %s31
      %p42 = scmp.eq.s32.totalorder %s22, 0
      %p43 = por %p41, %p42
      %p44 = scmp.ne.s32.totalorder %s30, %s31
      %p45 = scmp.eq.s32.totalorder %s23, 1
      %p46 = por %p44, %p45
      %p48 = scmp.ne.s32.totalorder %s31, %s47
      %p49 = scmp.eq.s32.totalorder %s23, 0
      %p50 = por %p48, %p49
      %s51 = ssub.s32 %s17, %s24
      %p52 = scmp.eq.s32.totalorder %s51, 0
      %s54 = sadd.s32 %s53, 1
      %s55 = scalar_select %p52, %s53, %s54
      %p58 = pneg %p52
      %p59 = scmp.eq.s32.totalorder %s17, 1
      %p60 = por %p58, %p59
      %p61 = scmp.ne.s32.totalorder %s53, %s56
      %p62 = scmp.eq.s32.totalorder %s17, 0
      %p63 = por %p61, %p62
      %p64 = scmp.ne.s32.totalorder %s53, %s56
      %p65 = scmp.eq.s32.totalorder %s22, 1
      %p66 = por %p64, %p65
      %p67 = scmp.ne.s32.totalorder %s56, %s57
      %p68 = scmp.eq.s32.totalorder %s22, 0
      %p69 = por %p67, %p68
      %p70 = scmp.ne.s32.totalorder %s56, %s57
      %p71 = scmp.eq.s32.totalorder %s23, 1
      %p72 = por %p70, %p71
      %p74 = scmp.ne.s32.totalorder %s57, %s73
      %p75 = scmp.eq.s32.totalorder %s23, 0
      %p76 = por %p74, %p75
      %s77 = ssub.s32 %s17, %s24
      %p78 = scmp.eq.s32.totalorder %s77, 0
      %s80 = sadd.s32 %s79, 1
      %s81 = scalar_select %p78, %s79, %s80
      %p84 = pneg %p78
      %p85 = scmp.eq.s32.totalorder %s17, 1
      %p86 = por %p84, %p85
      %p87 = scmp.ne.s32.totalorder %s79, %s82
      %p88 = scmp.eq.s32.totalorder %s17, 0
      %p89 = por %p87, %p88
      %p90 = scmp.ne.s32.totalorder %s79, %s82
      %p91 = scmp.eq.s32.totalorder %s22, 1
      %p92 = por %p90, %p91
      %p93 = scmp.ne.s32.totalorder %s82, %s83
      %p94 = scmp.eq.s32.totalorder %s22, 0
      %p95 = por %p93, %p94
      %p96 = scmp.ne.s32.totalorder %s82, %s83
      %p97 = scmp.eq.s32.totalorder %s23, 1
      %p98 = por %p96, %p97
      %p100 = scmp.ne.s32.totalorder %s83, %s99
      %p101 = scmp.eq.s32.totalorder %s23, 0
      %p102 = por %p100, %p101
      %s103 = ssub.s32 %s17, %s24
      %p104 = scmp.eq.s32.totalorder %s103, 0
      %s106 = sadd.s32 %s105, 1
      %s107 = scalar_select %p104, %s105, %s106
      %p110 = pneg %p104
      %p111 = scmp.eq.s32.totalorder %s17, 1
      %p112 = por %p110, %p111
      %p113 = scmp.ne.s32.totalorder %s105, %s108
      %p114 = scmp.eq.s32.totalorder %s17, 0
      %p115 = por %p113, %p114
      %p116 = scmp.ne.s32.totalorder %s105, %s108
      %p117 = scmp.eq.s32.totalorder %s22, 1
      %p118 = por %p116, %p117
      %p119 = scmp.ne.s32.totalorder %s108, %s109
      %p120 = scmp.eq.s32.totalorder %s22, 0
      %p121 = por %p119, %p120
      %p122 = scmp.ne.s32.totalorder %s108, %s109
      %p123 = scmp.eq.s32.totalorder %s23, 1
      %p124 = por %p122, %p123
      %p126 = scmp.ne.s32.totalorder %s109, %s125
      %p127 = scmp.eq.s32.totalorder %s23, 0
      %p128 = por %p126, %p127
      %s130 = sadd.s32 %s129, 1
      %p133 = scmp.eq.s32.totalorder %s17, 1
      %p134 = scmp.ne.s32.totalorder %s129, %s131
      %p135 = scmp.eq.s32.totalorder %s17, 0
      %p136 = por %p134, %p135
      %p137 = scmp.ne.s32.totalorder %s129, %s131
      %p138 = scmp.eq.s32.totalorder %s22, 1
      %p139 = por %p137, %p138
      %p140 = scmp.ne.s32.totalorder %s131, %s132
      %p141 = scmp.eq.s32.totalorder %s22, 0
      %p142 = por %p140, %p141
      %p143 = scmp.ne.s32.totalorder %s131, %s132
      %p144 = scmp.eq.s32.totalorder %s23, 1
      %p145 = por %p143, %p144
      %p147 = scmp.ne.s32.totalorder %s132, %s146
      %p148 = scmp.eq.s32.totalorder %s23, 0
      %p149 = por %p147, %p148
      %s151 = sadd.s32 %s150, 1
      %p154 = scmp.eq.s32.totalorder %s17, 1
      %p155 = scmp.ne.s32.totalorder %s150, %s152
      %p156 = scmp.eq.s32.totalorder %s17, 0
      %p157 = por %p155, %p156
      %p158 = scmp.ne.s32.totalorder %s150, %s152
      %p159 = scmp.eq.s32.totalorder %s22, 1
      %p160 = por %p158, %p159
      %p161 = scmp.ne.s32.totalorder %s152, %s153
      %p162 = scmp.eq.s32.totalorder %s22, 0
      %p163 = por %p161, %p162
      %p164 = scmp.ne.s32.totalorder %s152, %s153
      %p165 = scmp.eq.s32.totalorder %s23, 1
      %p166 = por %p164, %p165
      %p168 = scmp.ne.s32.totalorder %s153, %s167
      %p169 = scmp.eq.s32.totalorder %s23, 0
      %p170 = por %p168, %p169
      %s172 = sadd.s32 %s171, 1
      %p175 = scmp.eq.s32.totalorder %s17, 1
      %p176 = scmp.ne.s32.totalorder %s171, %s173
      %p177 = scmp.eq.s32.totalorder %s17, 0
      %p178 = por %p176, %p177
      %p179 = scmp.ne.s32.totalorder %s171, %s173
      %p180 = scmp.eq.s32.totalorder %s22, 1
      %p181 = por %p179, %p180
      %p182 = scmp.ne.s32.totalorder %s173, %s174
      %p183 = scmp.eq.s32.totalorder %s22, 0
      %p184 = por %p182, %p183
      %p185 = scmp.ne.s32.totalorder %s173, %s174
      %p186 = scmp.eq.s32.totalorder %s23, 1
      %p187 = por %p185, %p186
      %p189 = scmp.ne.s32.totalorder %s174, %s188
      %p190 = scmp.eq.s32.totalorder %s23, 0
      %p191 = por %p189, %p190
      %s193 = sadd.s32 %s192, 1
      %p196 = scmp.eq.s32.totalorder %s17, 1
      %p197 = scmp.ne.s32.totalorder %s192, %s194
      %p198 = scmp.eq.s32.totalorder %s17, 0
      %p199 = por %p197, %p198
      %p200 = scmp.ne.s32.totalorder %s192, %s194
      %p201 = scmp.eq.s32.totalorder %s22, 1
      %p202 = por %p200, %p201
      %p203 = scmp.ne.s32.totalorder %s194, %s195
      %p204 = scmp.eq.s32.totalorder %s22, 0
      %p205 = por %p203, %p204
      %p206 = scmp.ne.s32.totalorder %s194, %s195
      %p207 = scmp.eq.s32.totalorder %s23, 1
      %p208 = por %p206, %p207
      %p210 = scmp.ne.s32.totalorder %s195, %s209
      %p211 = scmp.eq.s32.totalorder %s23, 0
      %p212 = por %p210, %p211
      %s213 = ssub.s32 %s17, %s24
      %p214 = scmp.eq.s32.totalorder %s213, 0
      %s216 = sadd.s32 %s215, 1
      %s217 = scalar_select %p214, %s215, %s216
      %p220 = pneg %p214
      %p221 = scmp.eq.s32.totalorder %s17, 1
      %p222 = por %p220, %p221
      %p223 = scmp.ne.s32.totalorder %s215, %s218
      %p224 = scmp.eq.s32.totalorder %s17, 0
      %p225 = por %p223, %p224
      %p226 = scmp.ne.s32.totalorder %s215, %s218
      %p227 = scmp.eq.s32.totalorder %s22, 1
      %p228 = por %p226, %p227
      %p229 = scmp.ne.s32.totalorder %s218, %s219
      %p230 = scmp.eq.s32.totalorder %s22, 0
      %p231 = por %p229, %p230
      %p232 = scmp.ne.s32.totalorder %s218, %s219
      %p233 = scmp.eq.s32.totalorder %s23, 1
      %p234 = por %p232, %p233
      %p236 = scmp.ne.s32.totalorder %s219, %s235
      %p237 = scmp.eq.s32.totalorder %s23, 0
      %p238 = por %p236, %p237
      %p239 = scmp.le.s32.totalorder 1, %s17
      %p240 = scmp.lt.s32.totalorder %s17, 3
      %p241 = pnand %p239, %p240
      %p242 = pneg %p241
      // Predicated region
      $region9: #{tpu_custom_call.1} parent=5 // pred_check
        _
      $region10: #{tpu_custom_call.1} parent=5 // pred_check_branch
        %244 = sbr.rel (%p241) target = $region12
      $region11: #{tpu_custom_call.1} parent=5 // pred_region
        %s245 = ssub.s32 %s17, 1
        // Predicated region
        $region13: #{tpu_custom_call.1} parent=11 // pred_check
          %p246 = pneg %p142
        $region14: #{tpu_custom_call.1} parent=11 // pred_check_branch
          %248 = sbr.rel (%p246) target = $region16
        $region15: #{tpu_custom_call.1} parent=11 // pred_region
          _
        $region16: #{tpu_custom_call.1} parent=11 // pred_fallthru
          _
        // Predicated region
        $region17: #{tpu_custom_call.1} parent=11 // pred_check
          %p249 = pneg %p163
        $region18: #{tpu_custom_call.1} parent=11 // pred_check_branch
          %251 = sbr.rel (%p249) target = $region20
        $region19: #{tpu_custom_call.1} parent=11 // pred_region
          _
        $region20: #{tpu_custom_call.1} parent=11 // pred_fallthru
          _
        // Predicated region
        $region21: #{tpu_custom_call.1} parent=11 // pred_check
          %p252 = pneg %p184
        $region22: #{tpu_custom_call.1} parent=11 // pred_check_branch
          %254 = sbr.rel (%p252) target = $region24
        $region23: #{tpu_custom_call.1} parent=11 // pred_region
          _
        $region24: #{tpu_custom_call.1} parent=11 // pred_fallthru
          _
        // Predicated region
        $region25: #{tpu_custom_call.1} parent=11 // pred_check
          %p255 = pneg %p205
        $region26: #{tpu_custom_call.1} parent=11 // pred_check_branch
          %257 = sbr.rel (%p255) target = $region28
        $region27: #{tpu_custom_call.1} parent=11 // pred_region
          _
        $region28: #{tpu_custom_call.1} parent=11 // pred_fallthru
          _
      $region12: #{tpu_custom_call.1} parent=5 // pred_fallthru
        _
      %p258 = scmp.lt.s32.totalorder %s17, 2
      // Predicated region
      $region29: #{tpu_custom_call.1} parent=5 // pred_check
        %p259 = pneg %p258
      $region30: #{tpu_custom_call.1} parent=5 // pred_check_branch
        %261 = sbr.rel (%p259) target = $region32
      $region31: #{tpu_custom_call.1} parent=5 // pred_region
        // Predicated region
        $region33: #{tpu_custom_call.1} parent=31 // pred_check
          %p262 = pneg %p37
        $region34: #{tpu_custom_call.1} parent=31 // pred_check_branch
          %264 = sbr.rel (%p262) target = $region36
        $region35: #{tpu_custom_call.1} parent=31 // pred_region
          %s265 = smul.u32 2, %s17
          %p266 = scmp.lt.s32.totalorder %s265, 3
          %s267 = scalar_select %p266, %s265, 3
          %s268 = smul.addr %s267, 8
          %s269 = scalar_lea.vmem %s0, %s268
          %s270 = smul.u32 2, %s17
        $region36: #{tpu_custom_call.1} parent=31 // pred_fallthru
          _
        // Predicated region
        $region37: #{tpu_custom_call.1} parent=31 // pred_check
          %p271 = pneg %p63
        $region38: #{tpu_custom_call.1} parent=31 // pred_check_branch
          %273 = sbr.rel (%p271) target = $region40
        $region39: #{tpu_custom_call.1} parent=31 // pred_region
          %s274 = smul.u32 8, %s17
          %p275 = scmp.lt.s32.totalorder %s274, 15
          %s276 = scalar_select %p275, %s274, 15
          %s277 = smul.addr %s276, 8
          %s278 = scalar_lea.vmem %s1, %s277
          %s279 = smul.u32 8, %s17
        $region40: #{tpu_custom_call.1} parent=31 // pred_fallthru
          _
        // Predicated region
        $region41: #{tpu_custom_call.1} parent=31 // pred_check
          %p280 = pneg %p89
        $region42: #{tpu_custom_call.1} parent=31 // pred_check_branch
          %282 = sbr.rel (%p280) target = $region44
        $region43: #{tpu_custom_call.1} parent=31 // pred_region
          %s283 = smul.u32 8, %s17
          %p284 = scmp.lt.s32.totalorder %s283, 15
          %s285 = scalar_select %p284, %s283, 15
          %s286 = smul.addr %s285, 2
          %s287 = smul.addr %s286, 8
          %s288 = scalar_lea.vmem %s2, %s287
          %s289 = smul.u32 8, %s17
        $region44: #{tpu_custom_call.1} parent=31 // pred_fallthru
          _
        // Predicated region
        $region45: #{tpu_custom_call.1} parent=31 // pred_check
          %p290 = pneg %p115
        $region46: #{tpu_custom_call.1} parent=31 // pred_check_branch
          %292 = sbr.rel (%p290) target = $region48
        $region47: #{tpu_custom_call.1} parent=31 // pred_region
          %s293 = smul.u32 8, %s17
          %p294 = scmp.lt.s32.totalorder %s293, 15
          %s295 = scalar_select %p294, %s293, 15
          %s296 = smul.addr %s295, 3
          %s297 = smul.addr %s296, 8
          %s298 = scalar_lea.vmem %s3, %s297
          %s299 = smul.u32 8, %s17
        $region48: #{tpu_custom_call.1} parent=31 // pred_fallthru
          _
      $region32: #{tpu_custom_call.1} parent=5 // pred_fallthru
        _
      %p300 = scmp.le.s32.totalorder 1, %s17
      %p301 = scmp.lt.s32.totalorder %s17, 3
      %p302 = pnand %p300, %p301
      %p303 = pneg %p302
      // Predicated region
      $region49: #{tpu_custom_call.1} parent=5 // pred_check
        _
      $region50: #{tpu_custom_call.1} parent=5 // pred_check_branch
        %305 = sbr.rel (%p302) target = $region52
      $region51: #{tpu_custom_call.1} parent=5 // pred_region
        %s306 = ssub.s32 %s17, 1
        %s307 = smul.u32 2, %s22
        %p308 = scmp.lt.s32.totalorder %s307, 3
        %s309 = scalar_select %p308, %s307, 3
        %s310 = smul.addr %s309, 8
        %s311 = scalar_lea.vmem %s0, %s310
        %p312 = pneg %p43
        %p313 = pneg %p40
        %s314 = smul.u32 8, %s22
        %p315 = scmp.lt.s32.totalorder %s314, 15
        %s316 = scalar_select %p315, %s314, 15
        %s317 = smul.addr %s316, 8
        %s318 = scalar_lea.vmem %s1, %s317
        %p319 = pneg %p69
        %p320 = pneg %p66
        %s321 = smul.u32 8, %s22
        %p322 = scmp.lt.s32.totalorder %s321, 15
        %s323 = scalar_select %p322, %s321, 15
        %s324 = smul.addr %s323, 2
        %s325 = smul.addr %s324, 8
        %s326 = scalar_lea.vmem %s2, %s325
        %p327 = pneg %p95
        %p328 = pneg %p92
        %s329 = smul.u32 8, %s22
        %p330 = scmp.lt.s32.totalorder %s329, 15
        %s331 = scalar_select %p330, %s329, 15
        %s332 = smul.addr %s331, 3
        %s333 = smul.addr %s332, 8
        %s334 = scalar_lea.vmem %s3, %s333
        %p335 = pneg %p121
        %p336 = pneg %p118
        %p337 = pneg %p142
        %p338 = pneg %p139
        %p339 = pneg %p163
        %p340 = pneg %p160
        %p341 = pneg %p184
        %p342 = pneg %p181
        %p343 = pneg %p205
        %p344 = pneg %p202
        %p345 = pneg %p231
        %p346 = pneg %p228
        %s347 = sand.u32 %s218, 1
        %s348 = scalar_lea.sflag [#allocation3], %s347
        %s349 = sand.u32 %s218, 1
        %s350 = smul.addr %s349, 16
        %s351 = scalar_lea.vmem [#allocation2], %s350
        %s352 = smul.u32 2, %s22
        %p353 = scmp.lt.s32.totalorder %s352, 3
        %s354 = scalar_select %p353, %s352, 3
        %s355 = smul.addr %s354, 8
        %s356 = scalar_lea.vmem %s0, %s355
        %s357 = smul.u32 2, %s22
        %s358 = smul.u32 8, %s22
        %p359 = scmp.lt.s32.totalorder %s358, 15
        %s360 = scalar_select %p359, %s358, 15
        %s361 = smul.addr %s360, 8
        %s362 = scalar_lea.vmem %s1, %s361
        %s363 = smul.u32 8, %s22
        %s364 = smul.u32 8, %s22
        %p365 = scmp.lt.s32.totalorder %s364, 15
        %s366 = scalar_select %p365, %s364, 15
        %s367 = smul.addr %s366, 2
        %s368 = smul.addr %s367, 8
        %s369 = scalar_lea.vmem %s2, %s368
        %s370 = smul.u32 8, %s22
        %s371 = smul.u32 8, %s22
        %p372 = scmp.lt.s32.totalorder %s371, 15
        %s373 = scalar_select %p372, %s371, 15
        %s374 = smul.addr %s373, 3
        %s375 = smul.addr %s374, 8
        %s376 = scalar_lea.vmem %s3, %s375
        %s377 = smul.u32 8, %s22
        %s378 = smul.u32 2, %s22
        %v379 = vld [vmem:[%s362] sm:$0xff]
        %v380 = vld [vmem:[%s362 + $0x8] sm:$0xff]
        %v381 = vld [vmem:[%s362 + $0x10] sm:$0xff]
        %v382 = vld [vmem:[%s362 + $0x18] sm:$0xff]
        %v383 = vld [vmem:[%s362 + $0x20] sm:$0xff]
        %v384 = vld [vmem:[%s362 + $0x28] sm:$0xff]
        %v385 = vld [vmem:[%s362 + $0x30] sm:$0xff]
        %v386 = vld [vmem:[%s362 + $0x38] sm:$0xff]
        %v387 = vld [vmem:[%s369] sm:$0xff]
        %v388 = vld [vmem:[%s369 + $0x8] sm:$0xff]
        %v389 = vld [vmem:[%s369 + $0x10] sm:$0xff]
        %v390 = vld [vmem:[%s369 + $0x18] sm:$0xff]
        %v391 = vld [vmem:[%s369 + $0x20] sm:$0xff]
        %v392 = vld [vmem:[%s369 + $0x28] sm:$0xff]
        %v393 = vld [vmem:[%s369 + $0x30] sm:$0xff]
        %v394 = vld [vmem:[%s369 + $0x38] sm:$0xff]
        %v395 = vld [vmem:[%s369 + $0x40] sm:$0xff]
        %v396 = vld [vmem:[%s369 + $0x48] sm:$0xff]
        %v397 = vld [vmem:[%s369 + $0x50] sm:$0xff]
        %v398 = vld [vmem:[%s369 + $0x58] sm:$0xff]
        %v399 = vld [vmem:[%s369 + $0x60] sm:$0xff]
        %v400 = vld [vmem:[%s369 + $0x68] sm:$0xff]
        %v401 = vld [vmem:[%s369 + $0x70] sm:$0xff]
        %v402 = vld [vmem:[%s369 + $0x78] sm:$0xff]
        %v403 = vld [vmem:[%s376] sm:$0xff]
        %v404 = vld [vmem:[%s376 + $0x8] sm:$0xff]
        %v405 = vld [vmem:[%s376 + $0x10] sm:$0xff]
        %v406 = vld [vmem:[%s376 + $0x18] sm:$0xff]
        %v407 = vld [vmem:[%s376 + $0x20] sm:$0xff]
        %v408 = vld [vmem:[%s376 + $0x28] sm:$0xff]
        %v409 = vld [vmem:[%s376 + $0x30] sm:$0xff]
        %v410 = vld [vmem:[%s376 + $0x38] sm:$0xff]
        %v411 = vld [vmem:[%s376 + $0x40] sm:$0xff]
        %v412 = vld [vmem:[%s376 + $0x48] sm:$0xff]
        %v413 = vld [vmem:[%s376 + $0x50] sm:$0xff]
        %v414 = vld [vmem:[%s376 + $0x58] sm:$0xff]
        %v415 = vld [vmem:[%s376 + $0x60] sm:$0xff]
        %v416 = vld [vmem:[%s376 + $0x68] sm:$0xff]
        %v417 = vld [vmem:[%s376 + $0x70] sm:$0xff]
        %v418 = vld [vmem:[%s376 + $0x78] sm:$0xff]
        %v419 = vld [vmem:[%s376 + $0x80] sm:$0xff]
        %v420 = vld [vmem:[%s376 + $0x88] sm:$0xff]
        %v421 = vld [vmem:[%s376 + $0x90] sm:$0xff]
        %v422 = vld [vmem:[%s376 + $0x98] sm:$0xff]
        %v423 = vld [vmem:[%s376 + $0xa0] sm:$0xff]
        %v424 = vld [vmem:[%s376 + $0xa8] sm:$0xff]
        %v425 = vld [vmem:[%s376 + $0xb0] sm:$0xff]
        %v426 = vld [vmem:[%s376 + $0xb8] sm:$0xff]
        %vm427 = vcmask 130048
        %v429 = vsel %vm427, %v379, 0
        %431 = vmatpush.msra.mxu0 0.0
        %432 = vmatpush.msra.mxu0 0.0
        %433 = vmatpush.msra.mxu0 0.0
        %434 = vmatpush.msra.mxu0 0.0
        %435 = vmatpush.msra.mxu0 0.0
        %436 = vmatpush.msra.mxu0 0.0
        %437 = vmatpush.msra.mxu0 0.0
        %438 = vmatpush.msra.mxu0 0.0
        %439 = vmatpush.msra.mxu0 0.0
        %440 = vmatpush.msra.mxu0 0.0
        %441 = vmatpush.msra.mxu0 0.0
        %442 = vmatpush.msra.mxu0 0.0
        %443 = vmatpush.msra.mxu0 0.0
        %444 = vmatpush.msra.mxu0 0.0
        %445 = vmatpush.msra.mxu0 %v388
        %446 = vmatpush.msra.mxu0 %v387
        %447 = vmatmul.f32.gmra.mxu0 %v429
        %v448 = vpop.f32.mrf.mxu0
        %v449 = vadd.f32 0.0, %v448
        %450 = vdwg.mxu0
        %v452 = vsel %vm427, %v380, 0
        %454 = vmatpush.msra.mxu0 0.0
        %455 = vmatpush.msra.mxu0 0.0
        %456 = vmatpush.msra.mxu0 0.0
        %457 = vmatpush.msra.mxu0 0.0
        %458 = vmatpush.msra.mxu0 0.0
        %459 = vmatpush.msra.mxu0 0.0
        %460 = vmatpush.msra.mxu0 0.0
        %461 = vmatpush.msra.mxu0 0.0
        %462 = vmatpush.msra.mxu0 0.0
        %463 = vmatpush.msra.mxu0 0.0
        %464 = vmatpush.msra.mxu0 0.0
        %465 = vmatpush.msra.mxu0 0.0
        %466 = vmatpush.msra.mxu0 0.0
        %467 = vmatpush.msra.mxu0 0.0
        %468 = vmatpush.msra.mxu0 %v390
        %469 = vmatpush.msra.mxu0 %v389
        %470 = vmatmul.f32.gmra.mxu0 %v452
        %v471 = vpop.f32.mrf.mxu0
        %v472 = vadd.f32 0.0, %v471
        %473 = vdwg.mxu0
        %v475 = vsel %vm427, %v381, 0
        %477 = vmatpush.msra.mxu0 0.0
        %478 = vmatpush.msra.mxu0 0.0
        %479 = vmatpush.msra.mxu0 0.0
        %480 = vmatpush.msra.mxu0 0.0
        %481 = vmatpush.msra.mxu0 0.0
        %482 = vmatpush.msra.mxu0 0.0
        %483 = vmatpush.msra.mxu0 0.0
        %484 = vmatpush.msra.mxu0 0.0
        %485 = vmatpush.msra.mxu0 0.0
        %486 = vmatpush.msra.mxu0 0.0
        %487 = vmatpush.msra.mxu0 0.0
        %488 = vmatpush.msra.mxu0 0.0
        %489 = vmatpush.msra.mxu0 0.0
        %490 = vmatpush.msra.mxu0 0.0
        %491 = vmatpush.msra.mxu0 %v392
        %492 = vmatpush.msra.mxu0 %v391
        %493 = vmatmul.f32.gmra.mxu0 %v475
        %v494 = vpop.f32.mrf.mxu0
        %v495 = vadd.f32 0.0, %v494
        %496 = vdwg.mxu0
        %v498 = vsel %vm427, %v382, 0
        %500 = vmatpush.msra.mxu0 0.0
        %501 = vmatpush.msra.mxu0 0.0
        %502 = vmatpush.msra.mxu0 0.0
        %503 = vmatpush.msra.mxu0 0.0
        %504 = vmatpush.msra.mxu0 0.0
        %505 = vmatpush.msra.mxu0 0.0
        %506 = vmatpush.msra.mxu0 0.0
        %507 = vmatpush.msra.mxu0 0.0
        %508 = vmatpush.msra.mxu0 0.0
        %509 = vmatpush.msra.mxu0 0.0
        %510 = vmatpush.msra.mxu0 0.0
        %511 = vmatpush.msra.mxu0 0.0
        %512 = vmatpush.msra.mxu0 0.0
        %513 = vmatpush.msra.mxu0 0.0
        %514 = vmatpush.msra.mxu0 %v394
        %515 = vmatpush.msra.mxu0 %v393
        %516 = vmatmul.f32.gmra.mxu0 %v498
        %v517 = vpop.f32.mrf.mxu0
        %v518 = vadd.f32 0.0, %v517
        %519 = vdwg.mxu0
        %v521 = vsel %vm427, %v383, 0
        %523 = vmatpush.msra.mxu0 0.0
        %524 = vmatpush.msra.mxu0 0.0
        %525 = vmatpush.msra.mxu0 0.0
        %526 = vmatpush.msra.mxu0 0.0
        %527 = vmatpush.msra.mxu0 0.0
        %528 = vmatpush.msra.mxu0 0.0
        %529 = vmatpush.msra.mxu0 0.0
        %530 = vmatpush.msra.mxu0 0.0
        %531 = vmatpush.msra.mxu0 0.0
        %532 = vmatpush.msra.mxu0 0.0
        %533 = vmatpush.msra.mxu0 0.0
        %534 = vmatpush.msra.mxu0 0.0
        %535 = vmatpush.msra.mxu0 0.0
        %536 = vmatpush.msra.mxu0 0.0
        %537 = vmatpush.msra.mxu0 %v396
        %538 = vmatpush.msra.mxu0 %v395
        %539 = vmatmul.f32.gmra.mxu0 %v521
        %v540 = vpop.f32.mrf.mxu0
        %v541 = vadd.f32 0.0, %v540
        %542 = vdwg.mxu0
        %v544 = vsel %vm427, %v384, 0
        %546 = vmatpush.msra.mxu0 0.0
        %547 = vmatpush.msra.mxu0 0.0
        %548 = vmatpush.msra.mxu0 0.0
        %549 = vmatpush.msra.mxu0 0.0
        %550 = vmatpush.msra.mxu0 0.0
        %551 = vmatpush.msra.mxu0 0.0
        %552 = vmatpush.msra.mxu0 0.0
        %553 = vmatpush.msra.mxu0 0.0
        %554 = vmatpush.msra.mxu0 0.0
        %555 = vmatpush.msra.mxu0 0.0
        %556 = vmatpush.msra.mxu0 0.0
        %557 = vmatpush.msra.mxu0 0.0
        %558 = vmatpush.msra.mxu0 0.0
        %559 = vmatpush.msra.mxu0 0.0
        %560 = vmatpush.msra.mxu0 %v398
        %561 = vmatpush.msra.mxu0 %v397
        %562 = vmatmul.f32.gmra.mxu0 %v544
        %v563 = vpop.f32.mrf.mxu0
        %v564 = vadd.f32 0.0, %v563
        %565 = vdwg.mxu0
        %v567 = vsel %vm427, %v385, 0
        %569 = vmatpush.msra.mxu0 0.0
        %570 = vmatpush.msra.mxu0 0.0
        %571 = vmatpush.msra.mxu0 0.0
        %572 = vmatpush.msra.mxu0 0.0
        %573 = vmatpush.msra.mxu0 0.0
        %574 = vmatpush.msra.mxu0 0.0
        %575 = vmatpush.msra.mxu0 0.0
        %576 = vmatpush.msra.mxu0 0.0
        %577 = vmatpush.msra.mxu0 0.0
        %578 = vmatpush.msra.mxu0 0.0
        %579 = vmatpush.msra.mxu0 0.0
        %580 = vmatpush.msra.mxu0 0.0
        %581 = vmatpush.msra.mxu0 0.0
        %582 = vmatpush.msra.mxu0 0.0
        %583 = vmatpush.msra.mxu0 %v400
        %584 = vmatpush.msra.mxu0 %v399
        %585 = vmatmul.f32.gmra.mxu0 %v567
        %v586 = vpop.f32.mrf.mxu0
        %v587 = vadd.f32 0.0, %v586
        %588 = vdwg.mxu0
        %v590 = vsel %vm427, %v386, 0
        %592 = vmatpush.msra.mxu0 0.0
        %593 = vmatpush.msra.mxu0 0.0
        %594 = vmatpush.msra.mxu0 0.0
        %595 = vmatpush.msra.mxu0 0.0
        %596 = vmatpush.msra.mxu0 0.0
        %597 = vmatpush.msra.mxu0 0.0
        %598 = vmatpush.msra.mxu0 0.0
        %599 = vmatpush.msra.mxu0 0.0
        %600 = vmatpush.msra.mxu0 0.0
        %601 = vmatpush.msra.mxu0 0.0
        %602 = vmatpush.msra.mxu0 0.0
        %603 = vmatpush.msra.mxu0 0.0
        %604 = vmatpush.msra.mxu0 0.0
        %605 = vmatpush.msra.mxu0 0.0
        %606 = vmatpush.msra.mxu0 %v402
        %607 = vmatpush.msra.mxu0 %v401
        %608 = vmatmul.f32.gmra.mxu0 %v590
        %v609 = vpop.f32.mrf.mxu0
        %v610 = vadd.f32 0.0, %v609
        %611 = vdwg.mxu0
        %v612 = vmul.f32 %v449, 0.25
        %v613 = vmul.f32 %v472, 0.25
        %v614 = vmul.f32 %v495, 0.25
        %v615 = vmul.f32 %v518, 0.25
        %v616 = vmul.f32 %v541, 0.25
        %v617 = vmul.f32 %v564, 0.25
        %v618 = vmul.f32 %v587, 0.25
        %v619 = vmul.f32 %v610, 0.25
        %vm620 = vcmask 195584
        %v621 = vsel %vm620, %v612, -inf
        %622 = vmax.xlane.f32.xlu0 %v621
        %v623 = vpop.xlane.xlu0 %622
        %v624 = vsel %vm620, %v613, -inf
        %625 = vmax.xlane.f32.xlu0 %v624
        %v626 = vpop.xlane.xlu0 %625
        %v627 = vsel %vm620, %v614, -inf
        %628 = vmax.xlane.f32.xlu0 %v627
        %v629 = vpop.xlane.xlu0 %628
        %v630 = vsel %vm620, %v615, -inf
        %631 = vmax.xlane.f32.xlu0 %v630
        %v632 = vpop.xlane.xlu0 %631
        %v633 = vsel %vm620, %v616, -inf
        %634 = vmax.xlane.f32.xlu0 %v633
        %v635 = vpop.xlane.xlu0 %634
        %v636 = vsel %vm620, %v617, -inf
        %637 = vmax.xlane.f32.xlu0 %v636
        %v638 = vpop.xlane.xlu0 %637
        %v639 = vsel %vm620, %v618, -inf
        %640 = vmax.xlane.f32.xlu0 %v639
        %v641 = vpop.xlane.xlu0 %640
        %v642 = vsel %vm620, %v619, -inf
        %643 = vmax.xlane.f32.xlu0 %v642
        %v644 = vpop.xlane.xlu0 %643
        %v645 = vsub.f32 %v612, %v623
        %v646 = vsub.f32 %v613, %v626
        %v647 = vsub.f32 %v614, %v629
        %v648 = vsub.f32 %v615, %v632
        %v649 = vsub.f32 %v616, %v635
        %v650 = vsub.f32 %v617, %v638
        %v651 = vsub.f32 %v618, %v641
        %v652 = vsub.f32 %v619, %v644
        %v653 = vmul.f32 %v645, 1.442695
        %v654 = vpow.pop %v653
        %v655 = vmul.f32 %v646, 1.442695
        %v656 = vpow.pop %v655
        %v657 = vmul.f32 %v647, 1.442695
        %v658 = vpow.pop %v657
        %v659 = vmul.f32 %v648, 1.442695
        %v660 = vpow.pop %v659
        %v661 = vmul.f32 %v649, 1.442695
        %v662 = vpow.pop %v661
        %v663 = vmul.f32 %v650, 1.442695
        %v664 = vpow.pop %v663
        %v665 = vmul.f32 %v651, 1.442695
        %v666 = vpow.pop %v665
        %v667 = vmul.f32 %v652, 1.442695
        %v668 = vpow.pop %v667
        %v669 = vsel %vm620, %v654, 0.0
        %670 = vadd.xlane.f32.xlu0 %v669
        %v671 = vpop.xlane.xlu0 %670
        %v672 = vsel %vm620, %v656, 0.0
        %673 = vadd.xlane.f32.xlu0 %v672
        %v674 = vpop.xlane.xlu0 %673
        %v675 = vsel %vm620, %v658, 0.0
        %676 = vadd.xlane.f32.xlu0 %v675
        %v677 = vpop.xlane.xlu0 %676
        %v678 = vsel %vm620, %v660, 0.0
        %679 = vadd.xlane.f32.xlu0 %v678
        %v680 = vpop.xlane.xlu0 %679
        %v681 = vsel %vm620, %v662, 0.0
        %682 = vadd.xlane.f32.xlu0 %v681
        %v683 = vpop.xlane.xlu0 %682
        %v684 = vsel %vm620, %v664, 0.0
        %685 = vadd.xlane.f32.xlu0 %v684
        %v686 = vpop.xlane.xlu0 %685
        %v687 = vsel %vm620, %v666, 0.0
        %688 = vadd.xlane.f32.xlu0 %v687
        %v689 = vpop.xlane.xlu0 %688
        %v690 = vsel %vm620, %v668, 0.0
        %691 = vadd.xlane.f32.xlu0 %v690
        %v692 = vpop.xlane.xlu0 %691
        %v693 = vrcp.pop %v671
        %v694 = vmul.f32 %v671, %v693
        %v695 = vsub.f32 1.0, %v694
        %v696 = vmul.f32 %v693, %v695
        %v697 = vadd.f32 %v693, %v696
        %vm698 = vweird.f32 %v671
        %vm699 = vweird.f32 %v693
        %vm700 = vmor %vm698, %vm699
        %v701 = vsel %vm700, %v693, %v697
        %v702 = vand.u32 2147483647, %v671
        %vm703 = vcmp.eq.f32.partialorder %v702, 8.507059e+37
        %v704 = vand.u32 %v671, 2147483648
        %v705 = vor.u32 1.1754944e-38, %v704
        %v706 = vsel %vm703, %v705, %v701
        %v707 = vmul.f32 %v654, %v706
        %v708 = vrcp.pop %v674
        %v709 = vmul.f32 %v674, %v708
        %v710 = vsub.f32 1.0, %v709
        %v711 = vmul.f32 %v708, %v710
        %v712 = vadd.f32 %v708, %v711
        %vm713 = vweird.f32 %v674
        %vm714 = vweird.f32 %v708
        %vm715 = vmor %vm713, %vm714
        %v716 = vsel %vm715, %v708, %v712
        %v717 = vand.u32 2147483647, %v674
        %vm718 = vcmp.eq.f32.partialorder %v717, 8.507059e+37
        %v719 = vand.u32 %v674, 2147483648
        %v720 = vor.u32 1.1754944e-38, %v719
        %v721 = vsel %vm718, %v720, %v716
        %v722 = vmul.f32 %v656, %v721
        %v723 = vrcp.pop %v677
        %v724 = vmul.f32 %v677, %v723
        %v725 = vsub.f32 1.0, %v724
        %v726 = vmul.f32 %v723, %v725
        %v727 = vadd.f32 %v723, %v726
        %vm728 = vweird.f32 %v677
        %vm729 = vweird.f32 %v723
        %vm730 = vmor %vm728, %vm729
        %v731 = vsel %vm730, %v723, %v727
        %v732 = vand.u32 2147483647, %v677
        %vm733 = vcmp.eq.f32.partialorder %v732, 8.507059e+37
        %v734 = vand.u32 %v677, 2147483648
        %v735 = vor.u32 1.1754944e-38, %v734
        %v736 = vsel %vm733, %v735, %v731
        %v737 = vmul.f32 %v658, %v736
        %v738 = vrcp.pop %v680
        %v739 = vmul.f32 %v680, %v738
        %v740 = vsub.f32 1.0, %v739
        %v741 = vmul.f32 %v738, %v740
        %v742 = vadd.f32 %v738, %v741
        %vm743 = vweird.f32 %v680
        %vm744 = vweird.f32 %v738
        %vm745 = vmor %vm743, %vm744
        %v746 = vsel %vm745, %v738, %v742
        %v747 = vand.u32 2147483647, %v680
        %vm748 = vcmp.eq.f32.partialorder %v747, 8.507059e+37
        %v749 = vand.u32 %v680, 2147483648
        %v750 = vor.u32 1.1754944e-38, %v749
        %v751 = vsel %vm748, %v750, %v746
        %v752 = vmul.f32 %v660, %v751
        %v753 = vrcp.pop %v683
        %v754 = vmul.f32 %v683, %v753
        %v755 = vsub.f32 1.0, %v754
        %v756 = vmul.f32 %v753, %v755
        %v757 = vadd.f32 %v753, %v756
        %vm758 = vweird.f32 %v683
        %vm759 = vweird.f32 %v753
        %vm760 = vmor %vm758, %vm759
        %v761 = vsel %vm760, %v753, %v757
        %v762 = vand.u32 2147483647, %v683
        %vm763 = vcmp.eq.f32.partialorder %v762, 8.507059e+37
        %v764 = vand.u32 %v683, 2147483648
        %v765 = vor.u32 1.1754944e-38, %v764
        %v766 = vsel %vm763, %v765, %v761
        %v767 = vmul.f32 %v662, %v766
        %v768 = vrcp.pop %v686
        %v769 = vmul.f32 %v686, %v768
        %v770 = vsub.f32 1.0, %v769
        %v771 = vmul.f32 %v768, %v770
        %v772 = vadd.f32 %v768, %v771
        %vm773 = vweird.f32 %v686
        %vm774 = vweird.f32 %v768
        %vm775 = vmor %vm773, %vm774
        %v776 = vsel %vm775, %v768, %v772
        %v777 = vand.u32 2147483647, %v686
        %vm778 = vcmp.eq.f32.partialorder %v777, 8.507059e+37
        %v779 = vand.u32 %v686, 2147483648
        %v780 = vor.u32 1.1754944e-38, %v779
        %v781 = vsel %vm778, %v780, %v776
        %v782 = vmul.f32 %v664, %v781
        %v783 = vrcp.pop %v689
        %v784 = vmul.f32 %v689, %v783
        %v785 = vsub.f32 1.0, %v784
        %v786 = vmul.f32 %v783, %v785
        %v787 = vadd.f32 %v783, %v786
        %vm788 = vweird.f32 %v689
        %vm789 = vweird.f32 %v783
        %vm790 = vmor %vm788, %vm789
        %v791 = vsel %vm790, %v783, %v787
        %v792 = vand.u32 2147483647, %v689
        %vm793 = vcmp.eq.f32.partialorder %v792, 8.507059e+37
        %v794 = vand.u32 %v689, 2147483648
        %v795 = vor.u32 1.1754944e-38, %v794
        %v796 = vsel %vm793, %v795, %v791
        %v797 = vmul.f32 %v666, %v796
        %v798 = vrcp.pop %v692
        %v799 = vmul.f32 %v692, %v798
        %v800 = vsub.f32 1.0, %v799
        %v801 = vmul.f32 %v798, %v800
        %v802 = vadd.f32 %v798, %v801
        %vm803 = vweird.f32 %v692
        %vm804 = vweird.f32 %v798
        %vm805 = vmor %vm803, %vm804
        %v806 = vsel %vm805, %v798, %v802
        %v807 = vand.u32 2147483647, %v692
        %vm808 = vcmp.eq.f32.partialorder %v807, 8.507059e+37
        %v809 = vand.u32 %v692, 2147483648
        %v810 = vor.u32 1.1754944e-38, %v809
        %v811 = vsel %vm808, %v810, %v806
        %v812 = vmul.f32 %v668, %v811
        %v814 = vsel %vm620, %v707, 0
        %816 = vmatpush.msra.mxu0 0.0
        %817 = vmatpush.msra.mxu0 0.0
        %818 = vmatpush.msra.mxu0 0.0
        %819 = vmatpush.msra.mxu0 0.0
        %820 = vmatpush.msra.mxu0 0.0
        %821 = vmatpush.msra.mxu0 0.0
        %822 = vmatpush.msra.mxu0 0.0
        %823 = vmatpush.msra.mxu0 0.0
        %824 = vmatpush.msra.mxu0 0.0
        %825 = vmatpush.msra.mxu0 0.0
        %826 = vmatpush.msra.mxu0 0.0
        %827 = vmatpush.msra.mxu0 0.0
        %828 = vmatpush.msra.mxu0 0.0
        %829 = vmatpush.msra.mxu0 %v405
        %830 = vmatpush.msra.mxu0 %v404
        %831 = vmatpush.msra.mxu0 %v403
        %832 = vmatmul.f32.gmra.mxu0 %v814
        %v833 = vpop.f32.mrf.mxu0
        %v834 = vadd.f32 0.0, %v833
        %835 = vdwg.mxu0
        %v837 = vsel %vm620, %v722, 0
        %839 = vmatpush.msra.mxu0 0.0
        %840 = vmatpush.msra.mxu0 0.0
        %841 = vmatpush.msra.mxu0 0.0
        %842 = vmatpush.msra.mxu0 0.0
        %843 = vmatpush.msra.mxu0 0.0
        %844 = vmatpush.msra.mxu0 0.0
        %845 = vmatpush.msra.mxu0 0.0
        %846 = vmatpush.msra.mxu0 0.0
        %847 = vmatpush.msra.mxu0 0.0
        %848 = vmatpush.msra.mxu0 0.0
        %849 = vmatpush.msra.mxu0 0.0
        %850 = vmatpush.msra.mxu0 0.0
        %851 = vmatpush.msra.mxu0 0.0
        %852 = vmatpush.msra.mxu0 %v408
        %853 = vmatpush.msra.mxu0 %v407
        %854 = vmatpush.msra.mxu0 %v406
        %855 = vmatmul.f32.gmra.mxu0 %v837
        %v856 = vpop.f32.mrf.mxu0
        %v857 = vadd.f32 0.0, %v856
        %858 = vdwg.mxu0
        %v860 = vsel %vm620, %v737, 0
        %862 = vmatpush.msra.mxu0 0.0
        %863 = vmatpush.msra.mxu0 0.0
        %864 = vmatpush.msra.mxu0 0.0
        %865 = vmatpush.msra.mxu0 0.0
        %866 = vmatpush.msra.mxu0 0.0
        %867 = vmatpush.msra.mxu0 0.0
        %868 = vmatpush.msra.mxu0 0.0
        %869 = vmatpush.msra.mxu0 0.0
        %870 = vmatpush.msra.mxu0 0.0
        %871 = vmatpush.msra.mxu0 0.0
        %872 = vmatpush.msra.mxu0 0.0
        %873 = vmatpush.msra.mxu0 0.0
        %874 = vmatpush.msra.mxu0 0.0
        %875 = vmatpush.msra.mxu0 %v411
        %876 = vmatpush.msra.mxu0 %v410
        %877 = vmatpush.msra.mxu0 %v409
        %878 = vmatmul.f32.gmra.mxu0 %v860
        %v879 = vpop.f32.mrf.mxu0
        %v880 = vadd.f32 0.0, %v879
        %881 = vdwg.mxu0
        %v883 = vsel %vm620, %v752, 0
        %885 = vmatpush.msra.mxu0 0.0
        %886 = vmatpush.msra.mxu0 0.0
        %887 = vmatpush.msra.mxu0 0.0
        %888 = vmatpush.msra.mxu0 0.0
        %889 = vmatpush.msra.mxu0 0.0
        %890 = vmatpush.msra.mxu0 0.0
        %891 = vmatpush.msra.mxu0 0.0
        %892 = vmatpush.msra.mxu0 0.0
        %893 = vmatpush.msra.mxu0 0.0
        %894 = vmatpush.msra.mxu0 0.0
        %895 = vmatpush.msra.mxu0 0.0
        %896 = vmatpush.msra.mxu0 0.0
        %897 = vmatpush.msra.mxu0 0.0
        %898 = vmatpush.msra.mxu0 %v414
        %899 = vmatpush.msra.mxu0 %v413
        %900 = vmatpush.msra.mxu0 %v412
        %901 = vmatmul.f32.gmra.mxu0 %v883
        %v902 = vpop.f32.mrf.mxu0
        %v903 = vadd.f32 0.0, %v902
        %904 = vdwg.mxu0
        %v906 = vsel %vm620, %v767, 0
        %908 = vmatpush.msra.mxu0 0.0
        %909 = vmatpush.msra.mxu0 0.0
        %910 = vmatpush.msra.mxu0 0.0
        %911 = vmatpush.msra.mxu0 0.0
        %912 = vmatpush.msra.mxu0 0.0
        %913 = vmatpush.msra.mxu0 0.0
        %914 = vmatpush.msra.mxu0 0.0
        %915 = vmatpush.msra.mxu0 0.0
        %916 = vmatpush.msra.mxu0 0.0
        %917 = vmatpush.msra.mxu0 0.0
        %918 = vmatpush.msra.mxu0 0.0
        %919 = vmatpush.msra.mxu0 0.0
        %920 = vmatpush.msra.mxu0 0.0
        %921 = vmatpush.msra.mxu0 %v417
        %922 = vmatpush.msra.mxu0 %v416
        %923 = vmatpush.msra.mxu0 %v415
        %924 = vmatmul.f32.gmra.mxu0 %v906
        %v925 = vpop.f32.mrf.mxu0
        %v926 = vadd.f32 0.0, %v925
        %927 = vdwg.mxu0
        %v929 = vsel %vm620, %v782, 0
        %931 = vmatpush.msra.mxu0 0.0
        %932 = vmatpush.msra.mxu0 0.0
        %933 = vmatpush.msra.mxu0 0.0
        %934 = vmatpush.msra.mxu0 0.0
        %935 = vmatpush.msra.mxu0 0.0
        %936 = vmatpush.msra.mxu0 0.0
        %937 = vmatpush.msra.mxu0 0.0
        %938 = vmatpush.msra.mxu0 0.0
        %939 = vmatpush.msra.mxu0 0.0
        %940 = vmatpush.msra.mxu0 0.0
        %941 = vmatpush.msra.mxu0 0.0
        %942 = vmatpush.msra.mxu0 0.0
        %943 = vmatpush.msra.mxu0 0.0
        %944 = vmatpush.msra.mxu0 %v420
        %945 = vmatpush.msra.mxu0 %v419
        %946 = vmatpush.msra.mxu0 %v418
        %947 = vmatmul.f32.gmra.mxu0 %v929
        %v948 = vpop.f32.mrf.mxu0
        %v949 = vadd.f32 0.0, %v948
        %950 = vdwg.mxu0
        %v952 = vsel %vm620, %v797, 0
        %954 = vmatpush.msra.mxu0 0.0
        %955 = vmatpush.msra.mxu0 0.0
        %956 = vmatpush.msra.mxu0 0.0
        %957 = vmatpush.msra.mxu0 0.0
        %958 = vmatpush.msra.mxu0 0.0
        %959 = vmatpush.msra.mxu0 0.0
        %960 = vmatpush.msra.mxu0 0.0
        %961 = vmatpush.msra.mxu0 0.0
        %962 = vmatpush.msra.mxu0 0.0
        %963 = vmatpush.msra.mxu0 0.0
        %964 = vmatpush.msra.mxu0 0.0
        %965 = vmatpush.msra.mxu0 0.0
        %966 = vmatpush.msra.mxu0 0.0
        %967 = vmatpush.msra.mxu0 %v423
        %968 = vmatpush.msra.mxu0 %v422
        %969 = vmatpush.msra.mxu0 %v421
        %970 = vmatmul.f32.gmra.mxu0 %v952
        %v971 = vpop.f32.mrf.mxu0
        %v972 = vadd.f32 0.0, %v971
        %973 = vdwg.mxu0
        %v975 = vsel %vm620, %v812, 0
        %977 = vmatpush.msra.mxu0 0.0
        %978 = vmatpush.msra.mxu0 0.0
        %979 = vmatpush.msra.mxu0 0.0
        %980 = vmatpush.msra.mxu0 0.0
        %981 = vmatpush.msra.mxu0 0.0
        %982 = vmatpush.msra.mxu0 0.0
        %983 = vmatpush.msra.mxu0 0.0
        %984 = vmatpush.msra.mxu0 0.0
        %985 = vmatpush.msra.mxu0 0.0
        %986 = vmatpush.msra.mxu0 0.0
        %987 = vmatpush.msra.mxu0 0.0
        %988 = vmatpush.msra.mxu0 0.0
        %989 = vmatpush.msra.mxu0 0.0
        %990 = vmatpush.msra.mxu0 %v426
        %991 = vmatpush.msra.mxu0 %v425
        %992 = vmatpush.msra.mxu0 %v424
        %993 = vmatmul.f32.gmra.mxu0 %v975
        %v994 = vpop.f32.mrf.mxu0
        %v995 = vadd.f32 0.0, %v994
        %996 = vdwg.mxu0
        %v997 = vld [vmem:[%s4] sm:$0xff]
        %v998 = vld [vmem:[%s4 + $0x8] sm:$0xff]
        %v999 = vld [vmem:[%s4 + $0x10] sm:$0xff]
        %v1000 = vld [vmem:[%s4 + $0x18] sm:$0xff]
        %v1001 = vld [vmem:[%s4 + $0x20] sm:$0xff]
        %v1002 = vld [vmem:[%s4 + $0x28] sm:$0xff]
        %v1003 = vld [vmem:[%s4 + $0x30] sm:$0xff]
        %v1004 = vld [vmem:[%s4 + $0x38] sm:$0xff]
        %v1005 = vld [vmem:[%s4 + $0x40] sm:$0xff]
        %v1006 = vld [vmem:[%s4 + $0x48] sm:$0xff]
        %v1007 = vld [vmem:[%s4 + $0x50] sm:$0xff]
        %v1008 = vld [vmem:[%s4 + $0x58] sm:$0xff]
        %v1009 = vld [vmem:[%s4 + $0x60] sm:$0xff]
        %v1010 = vld [vmem:[%s4 + $0x68] sm:$0xff]
        %v1011 = vld [vmem:[%s4 + $0x70] sm:$0xff]
        %v1012 = vld [vmem:[%s4 + $0x78] sm:$0xff]
        %v1014 = vsel %vm427, %v834, 0
        %1016 = vmatpush.msra.mxu0 0.0
        %1017 = vmatpush.msra.mxu0 0.0
        %1018 = vmatpush.msra.mxu0 0.0
        %1019 = vmatpush.msra.mxu0 0.0
        %1020 = vmatpush.msra.mxu0 0.0
        %1021 = vmatpush.msra.mxu0 0.0
        %1022 = vmatpush.msra.mxu0 0.0
        %1023 = vmatpush.msra.mxu0 0.0
        %1024 = vmatpush.msra.mxu0 0.0
        %1025 = vmatpush.msra.mxu0 0.0
        %1026 = vmatpush.msra.mxu0 0.0
        %1027 = vmatpush.msra.mxu0 0.0
        %1028 = vmatpush.msra.mxu0 0.0
        %1029 = vmatpush.msra.mxu0 0.0
        %1030 = vmatpush.msra.mxu0 %v998
        %1031 = vmatpush.msra.mxu0 %v997
        %1032 = vmatmul.f32.gmra.mxu0 %v1014
        %v1033 = vpop.f32.mrf.mxu0
        %v1034 = vadd.f32 0.0, %v1033
        %1035 = vdwg.mxu0
        %v1037 = vsel %vm427, %v857, 0
        %1039 = vmatpush.msra.mxu0 0.0
        %1040 = vmatpush.msra.mxu0 0.0
        %1041 = vmatpush.msra.mxu0 0.0
        %1042 = vmatpush.msra.mxu0 0.0
        %1043 = vmatpush.msra.mxu0 0.0
        %1044 = vmatpush.msra.mxu0 0.0
        %1045 = vmatpush.msra.mxu0 0.0
        %1046 = vmatpush.msra.mxu0 0.0
        %1047 = vmatpush.msra.mxu0 0.0
        %1048 = vmatpush.msra.mxu0 0.0
        %1049 = vmatpush.msra.mxu0 0.0
        %1050 = vmatpush.msra.mxu0 0.0
        %1051 = vmatpush.msra.mxu0 0.0
        %1052 = vmatpush.msra.mxu0 0.0
        %1053 = vmatpush.msra.mxu0 %v1000
        %1054 = vmatpush.msra.mxu0 %v999
        %1055 = vmatmul.f32.gmra.mxu0 %v1037
        %v1056 = vpop.f32.mrf.mxu0
        %v1057 = vadd.f32 0.0, %v1056
        %1058 = vdwg.mxu0
        %v1060 = vsel %vm427, %v880, 0
        %1062 = vmatpush.msra.mxu0 0.0
        %1063 = vmatpush.msra.mxu0 0.0
        %1064 = vmatpush.msra.mxu0 0.0
        %1065 = vmatpush.msra.mxu0 0.0
        %1066 = vmatpush.msra.mxu0 0.0
        %1067 = vmatpush.msra.mxu0 0.0
        %1068 = vmatpush.msra.mxu0 0.0
        %1069 = vmatpush.msra.mxu0 0.0
        %1070 = vmatpush.msra.mxu0 0.0
        %1071 = vmatpush.msra.mxu0 0.0
        %1072 = vmatpush.msra.mxu0 0.0
        %1073 = vmatpush.msra.mxu0 0.0
        %1074 = vmatpush.msra.mxu0 0.0
        %1075 = vmatpush.msra.mxu0 0.0
        %1076 = vmatpush.msra.mxu0 %v1002
        %1077 = vmatpush.msra.mxu0 %v1001
        %1078 = vmatmul.f32.gmra.mxu0 %v1060
        %v1079 = vpop.f32.mrf.mxu0
        %v1080 = vadd.f32 0.0, %v1079
        %1081 = vdwg.mxu0
        %v1083 = vsel %vm427, %v903, 0
        %1085 = vmatpush.msra.mxu0 0.0
        %1086 = vmatpush.msra.mxu0 0.0
        %1087 = vmatpush.msra.mxu0 0.0
        %1088 = vmatpush.msra.mxu0 0.0
        %1089 = vmatpush.msra.mxu0 0.0
        %1090 = vmatpush.msra.mxu0 0.0
        %1091 = vmatpush.msra.mxu0 0.0
        %1092 = vmatpush.msra.mxu0 0.0
        %1093 = vmatpush.msra.mxu0 0.0
        %1094 = vmatpush.msra.mxu0 0.0
        %1095 = vmatpush.msra.mxu0 0.0
        %1096 = vmatpush.msra.mxu0 0.0
        %1097 = vmatpush.msra.mxu0 0.0
        %1098 = vmatpush.msra.mxu0 0.0
        %1099 = vmatpush.msra.mxu0 %v1004
        %1100 = vmatpush.msra.mxu0 %v1003
        %1101 = vmatmul.f32.gmra.mxu0 %v1083
        %v1102 = vpop.f32.mrf.mxu0
        %v1103 = vadd.f32 0.0, %v1102
        %1104 = vdwg.mxu0
        %v1106 = vsel %vm427, %v926, 0
        %1108 = vmatpush.msra.mxu0 0.0
        %1109 = vmatpush.msra.mxu0 0.0
        %1110 = vmatpush.msra.mxu0 0.0
        %1111 = vmatpush.msra.mxu0 0.0
        %1112 = vmatpush.msra.mxu0 0.0
        %1113 = vmatpush.msra.mxu0 0.0
        %1114 = vmatpush.msra.mxu0 0.0
        %1115 = vmatpush.msra.mxu0 0.0
        %1116 = vmatpush.msra.mxu0 0.0
        %1117 = vmatpush.msra.mxu0 0.0
        %1118 = vmatpush.msra.mxu0 0.0
        %1119 = vmatpush.msra.mxu0 0.0
        %1120 = vmatpush.msra.mxu0 0.0
        %1121 = vmatpush.msra.mxu0 0.0
        %1122 = vmatpush.msra.mxu0 %v1006
        %1123 = vmatpush.msra.mxu0 %v1005
        %1124 = vmatmul.f32.gmra.mxu0 %v1106
        %v1125 = vpop.f32.mrf.mxu0
        %v1126 = vadd.f32 0.0, %v1125
        %1127 = vdwg.mxu0
        %v1129 = vsel %vm427, %v949, 0
        %1131 = vmatpush.msra.mxu0 0.0
        %1132 = vmatpush.msra.mxu0 0.0
        %1133 = vmatpush.msra.mxu0 0.0
        %1134 = vmatpush.msra.mxu0 0.0
        %1135 = vmatpush.msra.mxu0 0.0
        %1136 = vmatpush.msra.mxu0 0.0
        %1137 = vmatpush.msra.mxu0 0.0
        %1138 = vmatpush.msra.mxu0 0.0
        %1139 = vmatpush.msra.mxu0 0.0
        %1140 = vmatpush.msra.mxu0 0.0
        %1141 = vmatpush.msra.mxu0 0.0
        %1142 = vmatpush.msra.mxu0 0.0
        %1143 = vmatpush.msra.mxu0 0.0
        %1144 = vmatpush.msra.mxu0 0.0
        %1145 = vmatpush.msra.mxu0 %v1008
        %1146 = vmatpush.msra.mxu0 %v1007
        %1147 = vmatmul.f32.gmra.mxu0 %v1129
        %v1148 = vpop.f32.mrf.mxu0
        %v1149 = vadd.f32 0.0, %v1148
        %1150 = vdwg.mxu0
        %v1152 = vsel %vm427, %v972, 0
        %1154 = vmatpush.msra.mxu0 0.0
        %1155 = vmatpush.msra.mxu0 0.0
        %1156 = vmatpush.msra.mxu0 0.0
        %1157 = vmatpush.msra.mxu0 0.0
        %1158 = vmatpush.msra.mxu0 0.0
        %1159 = vmatpush.msra.mxu0 0.0
        %1160 = vmatpush.msra.mxu0 0.0
        %1161 = vmatpush.msra.mxu0 0.0
        %1162 = vmatpush.msra.mxu0 0.0
        %1163 = vmatpush.msra.mxu0 0.0
        %1164 = vmatpush.msra.mxu0 0.0
        %1165 = vmatpush.msra.mxu0 0.0
        %1166 = vmatpush.msra.mxu0 0.0
        %1167 = vmatpush.msra.mxu0 0.0
        %1168 = vmatpush.msra.mxu0 %v1010
        %1169 = vmatpush.msra.mxu0 %v1009
        %1170 = vmatmul.f32.gmra.mxu0 %v1152
        %v1171 = vpop.f32.mrf.mxu0
        %v1172 = vadd.f32 0.0, %v1171
        %1173 = vdwg.mxu0
        %v1175 = vsel %vm427, %v995, 0
        %1177 = vmatpush.msra.mxu0 0.0
        %1178 = vmatpush.msra.mxu0 0.0
        %1179 = vmatpush.msra.mxu0 0.0
        %1180 = vmatpush.msra.mxu0 0.0
        %1181 = vmatpush.msra.mxu0 0.0
        %1182 = vmatpush.msra.mxu0 0.0
        %1183 = vmatpush.msra.mxu0 0.0
        %1184 = vmatpush.msra.mxu0 0.0
        %1185 = vmatpush.msra.mxu0 0.0
        %1186 = vmatpush.msra.mxu0 0.0
        %1187 = vmatpush.msra.mxu0 0.0
        %1188 = vmatpush.msra.mxu0 0.0
        %1189 = vmatpush.msra.mxu0 0.0
        %1190 = vmatpush.msra.mxu0 0.0
        %1191 = vmatpush.msra.mxu0 %v1012
        %1192 = vmatpush.msra.mxu0 %v1011
        %1193 = vmatmul.f32.gmra.mxu0 %v1175
        %v1194 = vpop.f32.mrf.mxu0
        %v1195 = vadd.f32 0.0, %v1194
        %1196 = vdwg.mxu0
        %vm1197 = vcmask 261120
        %v1198 = vsel %vm1197, %v1034, 0.0
        %v1199 = vsel %vm1197, %v1057, 0.0
        %v1200 = vadd.f32 %v1198, %v1199
        %v1201 = vsel %vm1197, %v1080, 0.0
        %v1202 = vadd.f32 %v1200, %v1201
        %v1203 = vsel %vm1197, %v1103, 0.0
        %v1204 = vadd.f32 %v1202, %v1203
        %v1205 = vsel %vm1197, %v1126, 0.0
        %v1206 = vsel %vm1197, %v1149, 0.0
        %v1207 = vadd.f32 %v1205, %v1206
        %v1208 = vsel %vm1197, %v1172, 0.0
        %v1209 = vadd.f32 %v1207, %v1208
        %v1210 = vsel %vm1197, %v1195, 0.0
        %v1211 = vadd.f32 %v1209, %v1210
        %v1212 = vld [vmem:[%s5] sm:$0x1]
        %v1213 = vld [vmem:[%s5 + $0x1] sm:$0x1]
        %v1214 = vld [vmem:[%s5 + $0x2] sm:$0x1]
        %v1215 = vld [vmem:[%s5 + $0x3] sm:$0x1]
        %v1216 = vld [vmem:[%s5 + $0x4] sm:$0x1]
        %v1217 = vld [vmem:[%s356] sm:$0xff]
        %v1218 = vld [vmem:[%s356 + $0x8] sm:$0xff]
        %v1219 = vadd.f32 %v1217, %v1204
        %v1220 = vadd.f32 %v1218, %v1211
        %v1221 = vperm.slane %v1212, 0
        %v1222 = vadd.f32 %v1219, %v1221
        %v1223 = vadd.f32 %v1220, %v1221
        %v1224 = vsel %vm1197, %v1222, 0.0
        %1225 = vadd.xlane.f32.xlu0 %v1224
        %v1226 = vpop.xlane.xlu0 %1225
        %v1227 = vsel %vm1197, %v1223, 0.0
        %1228 = vadd.xlane.f32.xlu0 %v1227
        %v1229 = vpop.xlane.xlu0 %1228
        %v1230 = vrcp.pop 32.0
        %v1231 = vmul.f32 32.0, %v1230
        %v1232 = vsub.f32 1.0, %v1231
        %v1233 = vmul.f32 %v1230, %v1232
        %v1234 = vadd.f32 %v1230, %v1233
        %vm1235 = vweird.f32 %v1230
        %v1236 = vsel %vm1235, %v1230, %v1234
        %v1237 = vmul.f32 %v1226, %v1236
        %v1238 = vmul.f32 %v1229, %v1236
        %v1239 = vsub.f32 %v1222, %v1237
        %v1240 = vsub.f32 %v1223, %v1238
        %v1241 = vmul.f32 %v1239, %v1239
        %v1242 = vmul.f32 %v1240, %v1240
        %v1243 = vsel %vm1197, %v1241, 0.0
        %1244 = vadd.xlane.f32.xlu0 %v1243
        %v1245 = vpop.xlane.xlu0 %1244
        %v1246 = vsel %vm1197, %v1242, 0.0
        %1247 = vadd.xlane.f32.xlu0 %v1246
        %v1248 = vpop.xlane.xlu0 %1247
        %v1249 = vmul.f32 %v1245, %v1236
        %v1250 = vmul.f32 %v1248, %v1236
        %v1251 = vadd.f32 %v1249, 1e-05
        %v1252 = vadd.f32 %v1250, 1e-05
        %v1253 = vrsqrt.pop %v1251
        %v1254 = vmul.f32 %v1253, %v1251
        %v1255 = vmul.f32 %v1254, %v1253
        %v1256 = vmul.f32 0.5, %v1255
        %v1257 = vsub.f32 1.5, %v1256
        %v1258 = vmul.f32 %v1253, %v1257
        %vm1259 = vweird.f32 %v1251
        %vm1260 = vweird.f32 %v1253
        %vm1261 = vmor %vm1259, %vm1260
        %v1262 = vsel %vm1261, %v1253, %v1258
        %v1263 = vrsqrt.pop %v1252
        %v1264 = vmul.f32 %v1263, %v1252
        %v1265 = vmul.f32 %v1264, %v1263
        %v1266 = vmul.f32 0.5, %v1265
        %v1267 = vsub.f32 1.5, %v1266
        %v1268 = vmul.f32 %v1263, %v1267
        %vm1269 = vweird.f32 %v1252
        %vm1270 = vweird.f32 %v1263
        %vm1271 = vmor %vm1269, %vm1270
        %v1272 = vsel %vm1271, %v1263, %v1268
        %v1273 = vmul.f32 %v1239, %v1262
        %v1274 = vmul.f32 %v1240, %v1272
        %v1275 = vperm.slane %v1213, 0
        %v1276 = vmul.f32 %v1273, %v1275
        %v1277 = vmul.f32 %v1274, %v1275
        %v1278 = vperm.slane %v1214, 0
        %v1279 = vadd.f32 %v1276, %v1278
        %v1280 = vadd.f32 %v1277, %v1278
        %v1281 = vld [vmem:[%s6] sm:$0xff]
        %v1282 = vld [vmem:[%s6 + $0x8] sm:$0xff]
        %v1283 = vld [vmem:[%s6 + $0x10] sm:$0xff]
        %v1284 = vld [vmem:[%s6 + $0x18] sm:$0xff]
        %v1285 = vperm.slane %v1215, 0
        %v1287 = vsel %vm1197, %v1279, 0
        %v1290 = vsel %vm1197, %v1280, 0
        %1292 = vmatpush.msra.mxu0 0.0
        %1293 = vmatpush.msra.mxu0 0.0
        %1294 = vmatpush.msra.mxu0 0.0
        %1295 = vmatpush.msra.mxu0 0.0
        %1296 = vmatpush.msra.mxu0 0.0
        %1297 = vmatpush.msra.mxu0 0.0
        %1298 = vmatpush.msra.mxu0 0.0
        %1299 = vmatpush.msra.mxu0 0.0
        %1300 = vmatpush.msra.mxu0 0.0
        %1301 = vmatpush.msra.mxu0 0.0
        %1302 = vmatpush.msra.mxu0 0.0
        %1303 = vmatpush.msra.mxu0 0.0
        %1304 = vmatpush.msra.mxu0 %v1284
        %1305 = vmatpush.msra.mxu0 %v1283
        %1306 = vmatpush.msra.mxu0 %v1282
        %1307 = vmatpush.msra.mxu0 %v1281
        %1308 = vmatmul.f32.gmra.mxu0 %v1287
        %v1309 = vpop.f32.mrf.mxu0
        %v1310 = vadd.f32 %v1285, %v1309
        %1311 = vmatmul.f32.gmra.mxu0 %v1290
        %v1312 = vpop.f32.mrf.mxu0
        %v1313 = vadd.f32 %v1285, %v1312
        %1314 = vdwg.mxu0
        %v1315 = vmul.f32 %v1310, 0.5
        %v1316 = vmul.f32 %v1313, 0.5
        %v1317 = vmul.f32 %v1310, 0.70710677
        %v1318 = vmul.f32 %v1313, 0.70710677
        %v1319 = vmul.f32 %v1317, %v1317
        %v1320 = vmin.f32 16.0, %v1319
        %v1321 = vmul.f32 %v1320, 2.1237322e-06
        %v1322 = vadd.f32 %v1321, 0.00028619796
        %v1323 = vmul.f32 %v1320, %v1322
        %v1324 = vadd.f32 %v1323, 0.0036580483
        %v1325 = vmul.f32 %v1320, %v1324
        %v1326 = vadd.f32 %v1325, 0.05243302
        %v1327 = vmul.f32 %v1320, %v1326
        %v1328 = vadd.f32 %v1327, 0.18741608
        %v1329 = vmul.f32 %v1320, %v1328
        %v1330 = vadd.f32 %v1329, 1.1283791
        %v1331 = vmul.f32 %v1317, %v1330
        %v1332 = vmul.f32 %v1320, 3.8918573e-05
        %v1333 = vadd.f32 %v1332, 0.001143296
        %v1334 = vmul.f32 %v1320, %v1333
        %v1335 = vadd.f32 %v1334, 0.014752088
        %v1336 = vmul.f32 %v1320, %v1335
        %v1337 = vadd.f32 %v1336, 0.112945676
        %v1338 = vmul.f32 %v1320, %v1337
        %v1339 = vadd.f32 %v1338, 0.4994258
        %v1340 = vmul.f32 %v1320, %v1339
        %v1341 = vadd.f32 %v1340, 1.0
        %v1342 = vrcp.pop %v1341
        %v1343 = vmul.f32 %v1341, %v1342
        %v1344 = vsub.f32 1.0, %v1343
        %v1345 = vmul.f32 %v1342, %v1344
        %v1346 = vadd.f32 %v1342, %v1345
        %vm1347 = vweird.f32 %v1341
        %vm1348 = vweird.f32 %v1342
        %vm1349 = vmor %vm1347, %vm1348
        %v1350 = vsel %vm1349, %v1342, %v1346
        %v1351 = vand.u32 2147483647, %v1341
        %vm1352 = vcmp.eq.f32.partialorder %v1351, 8.507059e+37
        %v1353 = vand.u32 %v1341, 2147483648
        %v1354 = vor.u32 1.1754944e-38, %v1353
        %v1355 = vsel %vm1352, %v1354, %v1350
        %v1356 = vmul.f32 %v1331, %v1355
        %v1357 = vmin.f32 %v1356, 1.0
        %v1358 = vmax.f32 %v1357, -1.0
        %v1359 = vmul.f32 %v1318, %v1318
        %v1360 = vmin.f32 16.0, %v1359
        %v1361 = vmul.f32 %v1360, 2.1237322e-06
        %v1362 = vadd.f32 %v1361, 0.00028619796
        %v1363 = vmul.f32 %v1360, %v1362
        %v1364 = vadd.f32 %v1363, 0.0036580483
        %v1365 = vmul.f32 %v1360, %v1364
        %v1366 = vadd.f32 %v1365, 0.05243302
        %v1367 = vmul.f32 %v1360, %v1366
        %v1368 = vadd.f32 %v1367, 0.18741608
        %v1369 = vmul.f32 %v1360, %v1368
        %v1370 = vadd.f32 %v1369, 1.1283791
        %v1371 = vmul.f32 %v1318, %v1370
        %v1372 = vmul.f32 %v1360, 3.8918573e-05
        %v1373 = vadd.f32 %v1372, 0.001143296
        %v1374 = vmul.f32 %v1360, %v1373
        %v1375 = vadd.f32 %v1374, 0.014752088
        %v1376 = vmul.f32 %v1360, %v1375
        %v1377 = vadd.f32 %v1376, 0.112945676
        %v1378 = vmul.f32 %v1360, %v1377
        %v1379 = vadd.f32 %v1378, 0.4994258
        %v1380 = vmul.f32 %v1360, %v1379
        %v1381 = vadd.f32 %v1380, 1.0
        %v1382 = vrcp.pop %v1381
        %v1383 = vmul.f32 %v1381, %v1382
        %v1384 = vsub.f32 1.0, %v1383
        %v1385 = vmul.f32 %v1382, %v1384
        %v1386 = vadd.f32 %v1382, %v1385
        %vm1387 = vweird.f32 %v1381
        %vm1388 = vweird.f32 %v1382
        %vm1389 = vmor %vm1387, %vm1388
        %v1390 = vsel %vm1389, %v1382, %v1386
        %v1391 = vand.u32 2147483647, %v1381
        %vm1392 = vcmp.eq.f32.partialorder %v1391, 8.507059e+37
        %v1393 = vand.u32 %v1381, 2147483648
        %v1394 = vor.u32 1.1754944e-38, %v1393
        %v1395 = vsel %vm1392, %v1394, %v1390
        %v1396 = vmul.f32 %v1371, %v1395
        %v1397 = vmin.f32 %v1396, 1.0
        %v1398 = vmax.f32 %v1397, -1.0
        %v1399 = vadd.f32 %v1358, 1.0
        %v1400 = vadd.f32 %v1398, 1.0
        %v1401 = vmul.f32 %v1315, %v1399
        %v1402 = vmul.f32 %v1316, %v1400
        %v1403 = vld [vmem:[%s7] sm:$0xff]
        %v1404 = vld [vmem:[%s7 + $0x8] sm:$0xff]
        %v1405 = vld [vmem:[%s7 + $0x10] sm:$0xff]
        %v1406 = vld [vmem:[%s7 + $0x18] sm:$0xff]
        %v1407 = vld [vmem:[%s7 + $0x20] sm:$0xff]
        %v1408 = vld [vmem:[%s7 + $0x28] sm:$0xff]
        %v1409 = vld [vmem:[%s7 + $0x30] sm:$0xff]
        %v1410 = vld [vmem:[%s7 + $0x38] sm:$0xff]
        %v1411 = vperm.slane %v1216, 0
        %vm1412 = vcmask 523264
        %v1414 = vsel %vm1412, %v1401, 0
        %v1417 = vsel %vm1412, %v1402, 0
        %1419 = vmatpush.msra.mxu0 0.0
        %1420 = vmatpush.msra.mxu0 0.0
        %1421 = vmatpush.msra.mxu0 0.0
        %1422 = vmatpush.msra.mxu0 0.0
        %1423 = vmatpush.msra.mxu0 0.0
        %1424 = vmatpush.msra.mxu0 0.0
        %1425 = vmatpush.msra.mxu0 0.0
        %1426 = vmatpush.msra.mxu0 0.0
        %1427 = vmatpush.msra.mxu0 %v1410
        %1428 = vmatpush.msra.mxu0 %v1409
        %1429 = vmatpush.msra.mxu0 %v1408
        %1430 = vmatpush.msra.mxu0 %v1407
        %1431 = vmatpush.msra.mxu0 %v1406
        %1432 = vmatpush.msra.mxu0 %v1405
        %1433 = vmatpush.msra.mxu0 %v1404
        %1434 = vmatpush.msra.mxu0 %v1403
        %1435 = vmatmul.f32.gmra.mxu0 %v1414
        %v1436 = vpop.f32.mrf.mxu0
        %v1437 = vadd.f32 %v1411, %v1436
        %1438 = vmatmul.f32.gmra.mxu0 %v1417
        %v1439 = vpop.f32.mrf.mxu0
        %v1440 = vadd.f32 %v1411, %v1439
        %1441 = vdwg.mxu0
        %1442 = vst.msk [vmem:[%s351] sm:$0xff] %vm1197, %v1437
        %1443 = vst.msk [vmem:[%s351 + $0x8] sm:$0xff] %vm1197, %v1440
        %s1444 = sand.u32 %s218, 1
        %s1445 = scalar_lea.sflag [#allocation3], %s1444
        %s1446 = sand.u32 %s218, 1
        %s1447 = smul.addr %s1446, 16
        %s1448 = scalar_lea.vmem [#allocation2], %s1447
        // Predicated region
        $region53: #{tpu_custom_call.1} parent=51 // pred_check
          %p1449 = pneg %p228
        $region54: #{tpu_custom_call.1} parent=51 // pred_check_branch
          %1451 = sbr.rel (%p1449) target = $region56
        $region55: #{tpu_custom_call.1} parent=51 // pred_region
          %s1452 = smul.u32 2, %s22
          %1454 = vsyncadd %s1445, 0
          %s1455 = smul.addr %s1452, 8
          %s1456 = scalar_lea.hbm %s8, %s1455
          %s1457 = sshll.u32 %s1448, 4
          %s1458 = int_to_ptr.vmem [resolvable:$true] %s1457
          %s1459 = sshll.u32 %s1456, 4
          %s1460 = int_to_ptr.hbm [resolvable:$true] %s1459
          %1465 = dma.vmem_to_hbm [thread:$0]  %s1458, 256, %s1460, %s1445, 128, 128, 8
        $region56: #{tpu_custom_call.1} parent=51 // pred_fallthru
          _
      $region52: #{tpu_custom_call.1} parent=5 // pred_fallthru
        _
      %p1466 = scmp.le.s32.totalorder 2, %s17
      // Predicated region
      $region57: #{tpu_custom_call.1} parent=5 // pred_check
        %p1467 = pneg %p1466
      $region58: #{tpu_custom_call.1} parent=5 // pred_check_branch
        %1469 = sbr.rel (%p1467) target = $region60
      $region59: #{tpu_custom_call.1} parent=5 // pred_region
        %s1470 = ssub.s32 %s17, 2
        // Predicated region
        $region61: #{tpu_custom_call.1} parent=59 // pred_check
          %p1471 = pneg %p234
        $region62: #{tpu_custom_call.1} parent=59 // pred_check_branch
          %1473 = sbr.rel (%p1471) target = $region64
        $region63: #{tpu_custom_call.1} parent=59 // pred_region
          %s1474 = sand.u32 %s219, 1
          %s1475 = scalar_lea.sflag [#allocation3], %s1474
          %s1476 = sand.u32 %s219, 1
          %s1477 = smul.addr %s1476, 16
          %s1478 = scalar_lea.vmem [#allocation2], %s1477
          %1480 = dma.done %s1475, 256
        $region64: #{tpu_custom_call.1} parent=59 // pred_fallthru
          _
      $region60: #{tpu_custom_call.1} parent=5 // pred_fallthru
        _
    $region6: #{tpu_custom_call.1} parent=1 // loop_footer
      %s21 = sadd.s32 1, %s17
    $region7: #{tpu_custom_call.1} parent=1 // loop_footer_branch
      %16 = sbr.rel target = $region3
    $region8: #{tpu_custom_call.1} parent=1 // loop_exit
      _
    %1481 = vsyncpa [#allocation3], 1
    %s1482 = scalar_lea.sflag [#allocation3], 1
    %1483 = vsyncpa %s1482, 1

</llo_original>
